<compile_context>
chip_gen: v5e
topology: v5e:2x2
jax: 0.10.0
libtpu: 0.0.40
codegen_flags: <defaults>
</compile_context>

<pallas_src>
import jax
import jax.numpy as jnp
from jax.experimental import pallas as pl
from jax.experimental.pallas import tpu as pltpu


# ----------------------------- Pallas kernels ------------------------------

def _gemm_bias_relu_kernel(x_ref, w_ref, b_ref, o_ref):
    y = jnp.dot(x_ref[...], w_ref[...], preferred_element_type=jnp.float32)
    o_ref[...] = jnp.maximum(y + b_ref[...], 0.0).astype(o_ref.dtype)


def _gemm_bn_relu_kernel(x_ref, w_ref, b_ref, g_ref, bt_ref, o_ref):
    # conv-as-GEMM + bias, then training-mode BatchNorm2d over the rows
    # (rows are exactly the (N, H, W) samples, cols are channels), then ReLU.
    # All done on the f32 accumulator while it is resident in vregs.
    y = jnp.dot(x_ref[...], w_ref[...], preferred_element_type=jnp.float32)
    y = y + b_ref[...]
    mean = jnp.mean(y, axis=0, keepdims=True)
    var = jnp.mean(jnp.square(y - mean), axis=0, keepdims=True)
    yhat = (y - mean) * jax.lax.rsqrt(var + 1e-5)
    o_ref[...] = jnp.maximum(yhat * g_ref[...] + bt_ref[...], 0.0).astype(
        o_ref.dtype)


def _tail_kernel(cols_ref, w3_ref, b3_ref, wl1_ref, bl1_ref, wl2_ref, bl2_ref,
                 o_ref):
    # Fused: conv3 (9 spatial positions = 9 small GEMMs) + bias + ReLU,
    # flatten (folded into the pre-permuted wl1 blocks), Linear(288,128)+ReLU,
    # Linear(128, D). Intermediates live in vregs only.
    nb = o_ref.shape[0]
    nf = wl1_ref.shape[2]
    acc = jnp.zeros((nb, nf), jnp.float32)
    for p in range(cols_ref.shape[0]):            # unrolled at trace, 9 iters
        yp = jnp.dot(cols_ref[p], w3_ref[...],
                     preferred_element_type=jnp.float32)
        yp = jnp.maximum(yp + b3_ref[...], 0.0)
        acc = acc + jnp.dot(yp.astype(wl1_ref.dtype), wl1_ref[p],
                            preferred_element_type=jnp.float32)
    z1 = jnp.maximum(acc + bl1_ref[...], 0.0)
    out = jnp.dot(z1.astype(wl2_ref.dtype), wl2_ref[...],
                  preferred_element_type=jnp.float32) + bl2_ref[...]
    o_ref[...] = out


# ------------------------------ kernel wrappers -----------------------------

def conv_gemm_relu(cols, w, b):
    """cols: (M, K) bf16, w: (K, Co) bf16, b: (Co,) f32 -> relu(cols@w+b) bf16.

    Row-tiled grid with resident weights: keeps per-step VMEM bounded
    (v7x: 64 MiB physical) and shards the row axis across TensorCores.
    """
    M, K = cols.shape
    Co = w.shape[1]
    TM = M if M <= 512 else 512
    return pl.pallas_call(
        _gemm_bias_relu_kernel,
        out_shape=jax.ShapeDtypeStruct((M, Co), jnp.bfloat16),
        grid=(pl.cdiv(M, TM),),
        in_specs=[
            pl.BlockSpec((TM, K), lambda i: (i, 0)),
            pl.BlockSpec((K, Co), lambda i: (0, 0)),
            pl.BlockSpec((1, Co), lambda i: (0, 0)),
        ],
        out_specs=pl.BlockSpec((TM, Co), lambda i: (i, 0)),
        compiler_params=pltpu.CompilerParams(
            dimension_semantics=("parallel",)),
    )(cols, w, b.reshape(1, Co))


def conv_gemm_bn_relu(cols, w, b, gamma, beta):
    """Fused conv-GEMM + bias + train-mode BN + ReLU. Needs all rows in one
    block (batch statistics), which is fine at these sizes."""
    M, K = cols.shape
    Co = w.shape[1]
    return pl.pallas_call(
        _gemm_bn_relu_kernel,
        out_shape=jax.ShapeDtypeStruct((M, Co), jnp.bfloat16),
        grid=(1,),
        in_specs=[
            pl.BlockSpec((M, K), lambda i: (0, 0)),
            pl.BlockSpec((K, Co), lambda i: (0, 0)),
            pl.BlockSpec((1, Co), lambda i: (0, 0)),
            pl.BlockSpec((1, Co), lambda i: (0, 0)),
            pl.BlockSpec((1, Co), lambda i: (0, 0)),
        ],
        out_specs=pl.BlockSpec((M, Co), lambda i: (0, 0)),
    )(cols, w, b.reshape(1, Co), gamma.reshape(1, Co), beta.reshape(1, Co))


def tail_fused(cols3, w3, b3, wl1_blocks, bl1, wl2t, bl2):
    """cols3: (9, N, 144) bf16; returns (N, D) f32 = FC2(relu(FC1(flatten(
    relu(conv3)))))."""
    P, N, K = cols3.shape
    Co = w3.shape[1]
    F = wl1_blocks.shape[2]
    D = wl2t.shape[1]
    return pl.pallas_call(
        _tail_kernel,
        out_shape=jax.ShapeDtypeStruct((N, D), jnp.float32),
        grid=(1,),
        in_specs=[
            pl.BlockSpec((P, N, K), lambda i: (0, 0, 0)),
            pl.BlockSpec((K, Co), lambda i: (0, 0)),
            pl.BlockSpec((1, Co), lambda i: (0, 0)),
            pl.BlockSpec((P, Co, F), lambda i: (0, 0, 0)),
            pl.BlockSpec((1, F), lambda i: (0, 0)),
            pl.BlockSpec((F, D), lambda i: (0, 0)),
            pl.BlockSpec((1, D), lambda i: (0, 0)),
        ],
        out_specs=pl.BlockSpec((N, D), lambda i: (0, 0)),
    )(cols3, w3, b3.reshape(1, Co), wl1_blocks, bl1.reshape(1, F),
      wl2t, bl2.reshape(1, D))


# --------------------------------- glue -------------------------------------

def im2col_nhwc(x, k, stride, pad):
    """x: (N, H, W, C) -> (N*Ho*Wo, k*k*C); column order (kh, kw, C)."""
    if pad:
        x = jnp.pad(x, ((0, 0), (pad, pad), (pad, pad), (0, 0)))
    N, H, W, C = x.shape
    Ho = (H - k) // stride + 1
    Wo = (W - k) // stride + 1
    patches = []
    for i in range(k):
        for j in range(k):
            patches.append(x[:, i:i + stride * Ho:stride,
                              j:j + stride * Wo:stride, :])
    p = jnp.stack(patches, axis=3)                  # (N, Ho, Wo, k*k, C)
    cols = p.reshape(N * Ho * Wo, k * k * C)
    return cols, Ho, Wo


def init_params(key, encoded_space_dim, fc2_input_dim=128):
    ks = jax.random.split(key, 12)
    s = 0.05
    return {
        "w1": s * jax.random.normal(ks[0], (8, 1, 3, 3), jnp.float32),
        "b1": s * jax.random.normal(ks[1], (8,), jnp.float32),
        "w2": s * jax.random.normal(ks[2], (16, 8, 3, 3), jnp.float32),
        "b2": s * jax.random.normal(ks[3], (16,), jnp.float32),
        "gamma": 1.0 + 0.1 * jax.random.normal(ks[4], (16,), jnp.float32),
        "beta": 0.1 * jax.random.normal(ks[5], (16,), jnp.float32),
        "w3": s * jax.random.normal(ks[6], (32, 16, 3, 3), jnp.float32),
        "b3": s * jax.random.normal(ks[7], (32,), jnp.float32),
        "wl1": s * jax.random.normal(ks[8], (fc2_input_dim, 3 * 3 * 32),
                                     jnp.float32),
        "bl1": s * jax.random.normal(ks[9], (fc2_input_dim,), jnp.float32),
        "wl2": s * jax.random.normal(ks[10], (encoded_space_dim, 128),
                                     jnp.float32),
        "bl2": s * jax.random.normal(ks[11], (encoded_space_dim,),
                                     jnp.float32),
    }


def _encoder_forward(x, params):
    """x: (N, 1, 28, 28) NCHW -> (N, encoded_space_dim). iscond=False path."""
    N = x.shape[0]
    dt = jnp.bfloat16

    # NCHW -> NHWC; channels ride the lane dimension from here on.
    xh = jnp.transpose(x, (0, 2, 3, 1)).astype(dt)

    # Weights flattened as (kh, kw, cin, cout) to match NHWC im2col columns;
    # bf16 operands for the MXU, biases / BN params stay f32.
    w1 = jnp.transpose(params["w1"], (2, 3, 1, 0)).reshape(9, 8).astype(dt)
    w2 = jnp.transpose(params["w2"], (2, 3, 1, 0)).reshape(72, 16).astype(dt)
    w3 = jnp.transpose(params["w3"], (2, 3, 1, 0)).reshape(144, 32).astype(dt)
    # Fold PyTorch's channel-major flatten (index = c*9 + h*3 + w) into wl1:
    # block p = h*3 + w holds the (32, 128) slice consumed by position p.
    wl1_blocks = jnp.transpose(params["wl1"].reshape(-1, 32, 9),
                               (2, 1, 0)).astype(dt)        # (9, 32, 128)
    wl2t = params["wl2"].T.astype(dt)                        # (128, D)

    # Conv2d(1, 8, 3, stride=2, padding=1) + ReLU : 28 -> 14
    cols, ho, wo = im2col_nhwc(xh, 3, 2, 1)                  # (N*196, 9)
    h = conv_gemm_relu(cols, w1, params["b1"]).reshape(N, ho, wo, 8)

    # Conv2d(8, 16, 3, stride=2, padding=1) + BatchNorm2d(16) + ReLU : 14 -> 7
    cols, ho, wo = im2col_nhwc(h, 3, 2, 1)                   # (N*49, 72)
    h = conv_gemm_bn_relu(cols, w2, params["b2"], params["gamma"],
                          params["beta"]).reshape(N, ho, wo, 16)

    # Conv2d(16, 32, 3, stride=2, padding=0)+ReLU + Flatten + FC1+ReLU + FC2,
    # all fused in a single kernel.
    cols, ho, wo = im2col_nhwc(h, 3, 2, 0)                   # (N*9, 144)
    cols3 = cols.reshape(N, ho * wo, -1).transpose(1, 0, 2)  # (9, N, 144)
    z = tail_fused(cols3, w3, params["b3"], wl1_blocks, params["bl1"],
                   wl2t, params["bl2"])
    return z


encoder_forward = jax.jit(_encoder_forward)


if __name__ == "__main__":
    encoded_space_dim = 16
    key = jax.random.PRNGKey(0)
    kx, kp = jax.random.split(key)

    # Input must be 28x28 so the flatten dim equals 3*3*32 = 288.
    x = jax.random.normal(kx, (2, 1, 28, 28), jnp.float32)
    params = init_params(kp, encoded_space_dim)

    out = encoder_forward(x, params)
    out = jax.block_until_ready(out)
    assert out.shape == (2, encoded_space_dim), out.shape
    assert jnp.all(jnp.isfinite(out))
    print("KERNEL_OK")
</pallas_src>

<mosaic_0001>
module attributes {stable_mosaic.version = 11 : i64} {
  func.func @_gemm_bias_relu_kernel(%arg0: i32, %arg1: memref<392x9xbf16, #tpu.memory_space<vmem>>, %arg2: memref<9x8xbf16, #tpu.memory_space<vmem>>, %arg3: memref<1x8xf32, #tpu.memory_space<vmem>>, %arg4: memref<392x8xbf16, #tpu.memory_space<vmem>>) attributes {dimension_semantics = [#tpu.dimension_semantics<parallel>], iteration_bounds = array<i64: 1>, scalar_prefetch = 0 : i64, scratch_operands = 0 : i64, tpu.core_type = #tpu.core_type<tc>, window_params = [{transform_indices = @transform_0, window_bounds = array<i64: 392, 9>}, {pipeline_mode = #tpu.pipeline_mode<synchronous>, transform_indices = @transform_1, window_bounds = array<i64: 9, 8>}, {pipeline_mode = #tpu.pipeline_mode<synchronous>, transform_indices = @transform_2, window_bounds = array<i64: 1, 8>}, {transform_indices = @transform_3, window_bounds = array<i64: 392, 8>}]} {
    %c0 = arith.constant 0 : index
    %c0_0 = arith.constant 0 : index
    %0 = vector.load %arg1[%c0, %c0_0] : memref<392x9xbf16, #tpu.memory_space<vmem>>, vector<392x9xbf16>
    %c0_1 = arith.constant 0 : index
    %c0_2 = arith.constant 0 : index
    %1 = vector.load %arg2[%c0_1, %c0_2] : memref<9x8xbf16, #tpu.memory_space<vmem>>, vector<9x8xbf16>
    %cst = arith.constant dense<0.000000e+00> : vector<392x8xf32>
    %2 = tpu.matmul %0, %1, %cst {dimension_numbers = #tpu.dot_dimension_numbers<[1], [0], [0], [1], [0, 0, 1, 1], [], []>} : vector<392x9xbf16>, vector<9x8xbf16>, vector<392x8xf32> -> vector<392x8xf32>
    %c0_3 = arith.constant 0 : index
    %c0_4 = arith.constant 0 : index
    %3 = vector.load %arg3[%c0_3, %c0_4] : memref<1x8xf32, #tpu.memory_space<vmem>>, vector<1x8xf32>
    %4 = vector.broadcast %3 : vector<1x8xf32> to vector<392x8xf32>
    %5 = arith.addf %2, %4 : vector<392x8xf32>
    %cst_5 = arith.constant 0.000000e+00 : f32
    %6 = vector.broadcast %cst_5 : f32 to vector<392x8xf32>
    %7 = arith.maximumf %5, %6 : vector<392x8xf32>
    %8 = arith.truncf %7 : vector<392x8xf32> to vector<392x8xbf16>
    %c0_6 = arith.constant 0 : index
    %c0_7 = arith.constant 0 : index
    %9 = vector.load %arg4[%c0_6, %c0_7] : memref<392x8xbf16, #tpu.memory_space<vmem>>, vector<392x8xbf16>
    tpu.vector_store %arg4[%c0_6, %c0_7], %8 {strides = array<i32>} : memref<392x8xbf16, #tpu.memory_space<vmem>>, vector<392x8xbf16>,
    return
  }
  func.func @transform_0(%arg0: i32) -> (i32, i32) {
    %c0_i32 = arith.constant 0 : i32
    %c0_i32_0 = arith.constant 0 : i32
    return %arg0, %c0_i32 : i32, i32
  }
  func.func @transform_1(%arg0: i32) -> (i32, i32) {
    %c0_i32 = arith.constant 0 : i32
    %c0_i32_0 = arith.constant 0 : i32
    %c0_i32_1 = arith.constant 0 : i32
    return %c0_i32, %c0_i32_0 : i32, i32
  }
  func.func @transform_2(%arg0: i32) -> (i32, i32) {
    %c0_i32 = arith.constant 0 : i32
    %c0_i32_0 = arith.constant 0 : i32
    %c0_i32_1 = arith.constant 0 : i32
    return %c0_i32, %c0_i32_0 : i32, i32
  }
  func.func @transform_3(%arg0: i32) -> (i32, i32) {
    %c0_i32 = arith.constant 0 : i32
    %c0_i32_0 = arith.constant 0 : i32
    return %arg0, %c0_i32 : i32, i32
  }
}

module attributes {stable_mosaic.version = 11 : i64} {
  func.func @_gemm_bn_relu_kernel(%arg0: i32, %arg1: memref<98x72xbf16, #tpu.memory_space<vmem>>, %arg2: memref<72x16xbf16, #tpu.memory_space<vmem>>, %arg3: memref<1x16xf32, #tpu.memory_space<vmem>>, %arg4: memref<1x16xf32, #tpu.memory_space<vmem>>, %arg5: memref<1x16xf32, #tpu.memory_space<vmem>>, %arg6: memref<98x16xbf16, #tpu.memory_space<vmem>>) attributes {dimension_semantics = [#tpu.dimension_semantics<arbitrary>], iteration_bounds = array<i64: 1>, scalar_prefetch = 0 : i64, scratch_operands = 0 : i64, tpu.core_type = #tpu.core_type<tc>, window_params = [{pipeline_mode = #tpu.pipeline_mode<synchronous>, transform_indices = @transform_0, window_bounds = array<i64: 98, 72>}, {pipeline_mode = #tpu.pipeline_mode<synchronous>, transform_indices = @transform_1, window_bounds = array<i64: 72, 16>}, {pipeline_mode = #tpu.pipeline_mode<synchronous>, transform_indices = @transform_2, window_bounds = array<i64: 1, 16>}, {pipeline_mode = #tpu.pipeline_mode<synchronous>, transform_indices = @transform_3, window_bounds = array<i64: 1, 16>}, {pipeline_mode = #tpu.pipeline_mode<synchronous>, transform_indices = @transform_4, window_bounds = array<i64: 1, 16>}, {pipeline_mode = #tpu.pipeline_mode<synchronous>, transform_indices = @transform_5, window_bounds = array<i64: 98, 16>}]} {
    %c0 = arith.constant 0 : index
    %c0_0 = arith.constant 0 : index
    %0 = vector.load %arg1[%c0, %c0_0] : memref<98x72xbf16, #tpu.memory_space<vmem>>, vector<98x72xbf16>
    %c0_1 = arith.constant 0 : index
    %c0_2 = arith.constant 0 : index
    %1 = vector.load %arg2[%c0_1, %c0_2] : memref<72x16xbf16, #tpu.memory_space<vmem>>, vector<72x16xbf16>
    %cst = arith.constant dense<0.000000e+00> : vector<98x16xf32>
    %2 = tpu.matmul %0, %1, %cst {dimension_numbers = #tpu.dot_dimension_numbers<[1], [0], [0], [1], [0, 0, 1, 1], [], []>} : vector<98x72xbf16>, vector<72x16xbf16>, vector<98x16xf32> -> vector<98x16xf32>
    %c0_3 = arith.constant 0 : index
    %c0_4 = arith.constant 0 : index
    %3 = vector.load %arg3[%c0_3, %c0_4] : memref<1x16xf32, #tpu.memory_space<vmem>>, vector<1x16xf32>
    %4 = vector.broadcast %3 : vector<1x16xf32> to vector<98x16xf32>
    %5 = arith.addf %2, %4 : vector<98x16xf32>
    %cst_5 = arith.constant dense<0.000000e+00> : vector<16xf32>
    %6 = vector.multi_reduction <add>, %5, %cst_5 [0] : vector<98x16xf32> to vector<16xf32>
    %7 = vector.shape_cast %6 : vector<16xf32> to vector<1x16xf32>
    %cst_6 = arith.constant 9.800000e+01 : f32
    %8 = vector.broadcast %cst_6 : f32 to vector<1x16xf32>
    %9 = arith.divf %7, %8 : vector<1x16xf32>
    %10 = vector.broadcast %9 : vector<1x16xf32> to vector<98x16xf32>
    %11 = arith.subf %5, %10 : vector<98x16xf32>
    %12 = arith.mulf %11, %11 : vector<98x16xf32>
    %cst_7 = arith.constant dense<0.000000e+00> : vector<16xf32>
    %13 = vector.multi_reduction <add>, %12, %cst_7 [0] : vector<98x16xf32> to vector<16xf32>
    %14 = vector.shape_cast %13 : vector<16xf32> to vector<1x16xf32>
    %cst_8 = arith.constant 9.800000e+01 : f32
    %15 = vector.broadcast %cst_8 : f32 to vector<1x16xf32>
    %16 = arith.divf %14, %15 : vector<1x16xf32>
    %17 = vector.broadcast %9 : vector<1x16xf32> to vector<98x16xf32>
    %18 = arith.subf %5, %17 : vector<98x16xf32>
    %cst_9 = arith.constant 9.99999974E-6 : f32
    %19 = vector.broadcast %cst_9 : f32 to vector<1x16xf32>
    %20 = arith.addf %16, %19 : vector<1x16xf32>
    %21 = math.rsqrt %20 : vector<1x16xf32>
    %22 = vector.broadcast %21 : vector<1x16xf32> to vector<98x16xf32>
    %23 = arith.mulf %18, %22 : vector<98x16xf32>
    %c0_10 = arith.constant 0 : index
    %c0_11 = arith.constant 0 : index
    %24 = vector.load %arg4[%c0_10, %c0_11] : memref<1x16xf32, #tpu.memory_space<vmem>>, vector<1x16xf32>
    %25 = vector.broadcast %24 : vector<1x16xf32> to vector<98x16xf32>
    %26 = arith.mulf %23, %25 : vector<98x16xf32>
    %c0_12 = arith.constant 0 : index
    %c0_13 = arith.constant 0 : index
    %27 = vector.load %arg5[%c0_12, %c0_13] : memref<1x16xf32, #tpu.memory_space<vmem>>, vector<1x16xf32>
    %28 = vector.broadcast %27 : vector<1x16xf32> to vector<98x16xf32>
    %29 = arith.addf %26, %28 : vector<98x16xf32>
    %cst_14 = arith.constant 0.000000e+00 : f32
    %30 = vector.broadcast %cst_14 : f32 to vector<98x16xf32>
    %31 = arith.maximumf %29, %30 : vector<98x16xf32>
    %32 = arith.truncf %31 : vector<98x16xf32> to vector<98x16xbf16>
    %c0_15 = arith.constant 0 : index
    %c0_16 = arith.constant 0 : index
    %33 = vector.load %arg6[%c0_15, %c0_16] : memref<98x16xbf16, #tpu.memory_space<vmem>>, vector<98x16xbf16>
    tpu.vector_store %arg6[%c0_15, %c0_16], %32 {strides = array<i32>} : memref<98x16xbf16, #tpu.memory_space<vmem>>, vector<98x16xbf16>,
    return
  }
  func.func @transform_0(%arg0: i32) -> (i32, i32) {
    %c0_i32 = arith.constant 0 : i32
    %c0_i32_0 = arith.constant 0 : i32
    %c0_i32_1 = arith.constant 0 : i32
    return %c0_i32, %c0_i32_0 : i32, i32
  }
  func.func @transform_1(%arg0: i32) -> (i32, i32) {
    %c0_i32 = arith.constant 0 : i32
    %c0_i32_0 = arith.constant 0 : i32
    %c0_i32_1 = arith.constant 0 : i32
    return %c0_i32, %c0_i32_0 : i32, i32
  }
  func.func @transform_2(%arg0: i32) -> (i32, i32) {
    %c0_i32 = arith.constant 0 : i32
    %c0_i32_0 = arith.constant 0 : i32
    %c0_i32_1 = arith.constant 0 : i32
    return %c0_i32, %c0_i32_0 : i32, i32
  }
  func.func @transform_3(%arg0: i32) -> (i32, i32) {
    %c0_i32 = arith.constant 0 : i32
    %c0_i32_0 = arith.constant 0 : i32
    %c0_i32_1 = arith.constant 0 : i32
    return %c0_i32, %c0_i32_0 : i32, i32
  }
  func.func @transform_4(%arg0: i32) -> (i32, i32) {
    %c0_i32 = arith.constant 0 : i32
    %c0_i32_0 = arith.constant 0 : i32
    %c0_i32_1 = arith.constant 0 : i32
    return %c0_i32, %c0_i32_0 : i32, i32
  }
  func.func @transform_5(%arg0: i32) -> (i32, i32) {
    %c0_i32 = arith.constant 0 : i32
    %c0_i32_0 = arith.constant 0 : i32
    %c0_i32_1 = arith.constant 0 : i32
    return %c0_i32, %c0_i32_0 : i32, i32
  }
}

module attributes {stable_mosaic.version = 11 : i64} {
  func.func @_tail_kernel(%arg0: i32, %arg1: memref<9x2x144xbf16, #tpu.memory_space<vmem>>, %arg2: memref<144x32xbf16, #tpu.memory_space<vmem>>, %arg3: memref<1x32xf32, #tpu.memory_space<vmem>>, %arg4: memref<9x32x128xbf16, #tpu.memory_space<vmem>>, %arg5: memref<1x128xf32, #tpu.memory_space<vmem>>, %arg6: memref<128x16xbf16, #tpu.memory_space<vmem>>, %arg7: memref<1x16xf32, #tpu.memory_space<vmem>>, %arg8: memref<2x16xf32, #tpu.memory_space<vmem>>) attributes {dimension_semantics = [#tpu.dimension_semantics<arbitrary>], iteration_bounds = array<i64: 1>, scalar_prefetch = 0 : i64, scratch_operands = 0 : i64, tpu.core_type = #tpu.core_type<tc>, window_params = [{pipeline_mode = #tpu.pipeline_mode<synchronous>, transform_indices = @transform_0, window_bounds = array<i64: 9, 2, 144>}, {pipeline_mode = #tpu.pipeline_mode<synchronous>, transform_indices = @transform_1, window_bounds = array<i64: 144, 32>}, {pipeline_mode = #tpu.pipeline_mode<synchronous>, transform_indices = @transform_2, window_bounds = array<i64: 1, 32>}, {pipeline_mode = #tpu.pipeline_mode<synchronous>, transform_indices = @transform_3, window_bounds = array<i64: 9, 32, 128>}, {pipeline_mode = #tpu.pipeline_mode<synchronous>, transform_indices = @transform_4, window_bounds = array<i64: 1, 128>}, {pipeline_mode = #tpu.pipeline_mode<synchronous>, transform_indices = @transform_5, window_bounds = array<i64: 128, 16>}, {pipeline_mode = #tpu.pipeline_mode<synchronous>, transform_indices = @transform_6, window_bounds = array<i64: 1, 16>}, {pipeline_mode = #tpu.pipeline_mode<synchronous>, transform_indices = @transform_7, window_bounds = array<i64: 2, 16>}]} {
    %cst = arith.constant 0.000000e+00 : f32
    %0 = vector.broadcast %cst : f32 to vector<2x128xf32>
    %c0 = arith.constant 0 : index
    %c0_0 = arith.constant 0 : index
    %c0_1 = arith.constant 0 : index
    %1 = vector.load %arg1[%c0, %c0_0, %c0_1] : memref<9x2x144xbf16, #tpu.memory_space<vmem>>, vector<1x2x144xbf16>
    %2 = vector.shape_cast %1 : vector<1x2x144xbf16> to vector<2x144xbf16>
    %c0_2 = arith.constant 0 : index
    %c0_3 = arith.constant 0 : index
    %3 = vector.load %arg2[%c0_2, %c0_3] : memref<144x32xbf16, #tpu.memory_space<vmem>>, vector<144x32xbf16>
    %cst_4 = arith.constant dense<0.000000e+00> : vector<2x32xf32>
    %4 = tpu.matmul %2, %3, %cst_4 {dimension_numbers = #tpu.dot_dimension_numbers<[1], [0], [0], [1], [0, 0, 1, 1], [], []>} : vector<2x144xbf16>, vector<144x32xbf16>, vector<2x32xf32> -> vector<2x32xf32>
    %c0_5 = arith.constant 0 : index
    %c0_6 = arith.constant 0 : index
    %5 = vector.load %arg3[%c0_5, %c0_6] : memref<1x32xf32, #tpu.memory_space<vmem>>, vector<1x32xf32>
    %6 = vector.broadcast %5 : vector<1x32xf32> to vector<2x32xf32>
    %7 = arith.addf %4, %6 : vector<2x32xf32>
    %cst_7 = arith.constant 0.000000e+00 : f32
    %8 = vector.broadcast %cst_7 : f32 to vector<2x32xf32>
    %9 = arith.maximumf %7, %8 : vector<2x32xf32>
    %10 = arith.truncf %9 : vector<2x32xf32> to vector<2x32xbf16>
    %c0_8 = arith.constant 0 : index
    %c0_9 = arith.constant 0 : index
    %c0_10 = arith.constant 0 : index
    %11 = vector.load %arg4[%c0_8, %c0_9, %c0_10] : memref<9x32x128xbf16, #tpu.memory_space<vmem>>, vector<1x32x128xbf16>
    %12 = vector.shape_cast %11 : vector<1x32x128xbf16> to vector<32x128xbf16>
    %cst_11 = arith.constant dense<0.000000e+00> : vector<2x128xf32>
    %13 = tpu.matmul %10, %12, %cst_11 {dimension_numbers = #tpu.dot_dimension_numbers<[1], [0], [0], [1], [0, 0, 1, 1], [], []>} : vector<2x32xbf16>, vector<32x128xbf16>, vector<2x128xf32> -> vector<2x128xf32>
    %14 = arith.addf %0, %13 : vector<2x128xf32>
    %c1 = arith.constant 1 : index
    %c0_12 = arith.constant 0 : index
    %c0_13 = arith.constant 0 : index
    %15 = vector.load %arg1[%c1, %c0_12, %c0_13] : memref<9x2x144xbf16, #tpu.memory_space<vmem>>, vector<1x2x144xbf16>
    %16 = vector.shape_cast %15 : vector<1x2x144xbf16> to vector<2x144xbf16>
    %c0_14 = arith.constant 0 : index
    %c0_15 = arith.constant 0 : index
    %17 = vector.load %arg2[%c0_14, %c0_15] : memref<144x32xbf16, #tpu.memory_space<vmem>>, vector<144x32xbf16>
    %cst_16 = arith.constant dense<0.000000e+00> : vector<2x32xf32>
    %18 = tpu.matmul %16, %17, %cst_16 {dimension_numbers = #tpu.dot_dimension_numbers<[1], [0], [0], [1], [0, 0, 1, 1], [], []>} : vector<2x144xbf16>, vector<144x32xbf16>, vector<2x32xf32> -> vector<2x32xf32>
    %c0_17 = arith.constant 0 : index
    %c0_18 = arith.constant 0 : index
    %19 = vector.load %arg3[%c0_17, %c0_18] : memref<1x32xf32, #tpu.memory_space<vmem>>, vector<1x32xf32>
    %20 = vector.broadcast %19 : vector<1x32xf32> to vector<2x32xf32>
    %21 = arith.addf %18, %20 : vector<2x32xf32>
    %cst_19 = arith.constant 0.000000e+00 : f32
    %22 = vector.broadcast %cst_19 : f32 to vector<2x32xf32>
    %23 = arith.maximumf %21, %22 : vector<2x32xf32>
    %24 = arith.truncf %23 : vector<2x32xf32> to vector<2x32xbf16>
    %c1_20 = arith.constant 1 : index
    %c0_21 = arith.constant 0 : index
    %c0_22 = arith.constant 0 : index
    %25 = vector.load %arg4[%c1_20, %c0_21, %c0_22] : memref<9x32x128xbf16, #tpu.memory_space<vmem>>, vector<1x32x128xbf16>
    %26 = vector.shape_cast %25 : vector<1x32x128xbf16> to vector<32x128xbf16>
    %cst_23 = arith.constant dense<0.000000e+00> : vector<2x128xf32>
    %27 = tpu.matmul %24, %26, %cst_23 {dimension_numbers = #tpu.dot_dimension_numbers<[1], [0], [0], [1], [0, 0, 1, 1], [], []>} : vector<2x32xbf16>, vector<32x128xbf16>, vector<2x128xf32> -> vector<2x128xf32>
    %28 = arith.addf %14, %27 : vector<2x128xf32>
    %c2 = arith.constant 2 : index
    %c0_24 = arith.constant 0 : index
    %c0_25 = arith.constant 0 : index
    %29 = vector.load %arg1[%c2, %c0_24, %c0_25] : memref<9x2x144xbf16, #tpu.memory_space<vmem>>, vector<1x2x144xbf16>
    %30 = vector.shape_cast %29 : vector<1x2x144xbf16> to vector<2x144xbf16>
    %c0_26 = arith.constant 0 : index
    %c0_27 = arith.constant 0 : index
    %31 = vector.load %arg2[%c0_26, %c0_27] : memref<144x32xbf16, #tpu.memory_space<vmem>>, vector<144x32xbf16>
    %cst_28 = arith.constant dense<0.000000e+00> : vector<2x32xf32>
    %32 = tpu.matmul %30, %31, %cst_28 {dimension_numbers = #tpu.dot_dimension_numbers<[1], [0], [0], [1], [0, 0, 1, 1], [], []>} : vector<2x144xbf16>, vector<144x32xbf16>, vector<2x32xf32> -> vector<2x32xf32>
    %c0_29 = arith.constant 0 : index
    %c0_30 = arith.constant 0 : index
    %33 = vector.load %arg3[%c0_29, %c0_30] : memref<1x32xf32, #tpu.memory_space<vmem>>, vector<1x32xf32>
    %34 = vector.broadcast %33 : vector<1x32xf32> to vector<2x32xf32>
    %35 = arith.addf %32, %34 : vector<2x32xf32>
    %cst_31 = arith.constant 0.000000e+00 : f32
    %36 = vector.broadcast %cst_31 : f32 to vector<2x32xf32>
    %37 = arith.maximumf %35, %36 : vector<2x32xf32>
    %38 = arith.truncf %37 : vector<2x32xf32> to vector<2x32xbf16>
    %c2_32 = arith.constant 2 : index
    %c0_33 = arith.constant 0 : index
    %c0_34 = arith.constant 0 : index
    %39 = vector.load %arg4[%c2_32, %c0_33, %c0_34] : memref<9x32x128xbf16, #tpu.memory_space<vmem>>, vector<1x32x128xbf16>
    %40 = vector.shape_cast %39 : vector<1x32x128xbf16> to vector<32x128xbf16>
    %cst_35 = arith.constant dense<0.000000e+00> : vector<2x128xf32>
    %41 = tpu.matmul %38, %40, %cst_35 {dimension_numbers = #tpu.dot_dimension_numbers<[1], [0], [0], [1], [0, 0, 1, 1], [], []>} : vector<2x32xbf16>, vector<32x128xbf16>, vector<2x128xf32> -> vector<2x128xf32>
    %42 = arith.addf %28, %41 : vector<2x128xf32>
    %c3 = arith.constant 3 : index
    %c0_36 = arith.constant 0 : index
    %c0_37 = arith.constant 0 : index
    %43 = vector.load %arg1[%c3, %c0_36, %c0_37] : memref<9x2x144xbf16, #tpu.memory_space<vmem>>, vector<1x2x144xbf16>
    %44 = vector.shape_cast %43 : vector<1x2x144xbf16> to vector<2x144xbf16>
    %c0_38 = arith.constant 0 : index
    %c0_39 = arith.constant 0 : index
    %45 = vector.load %arg2[%c0_38, %c0_39] : memref<144x32xbf16, #tpu.memory_space<vmem>>, vector<144x32xbf16>
    %cst_40 = arith.constant dense<0.000000e+00> : vector<2x32xf32>
    %46 = tpu.matmul %44, %45, %cst_40 {dimension_numbers = #tpu.dot_dimension_numbers<[1], [0], [0], [1], [0, 0, 1, 1], [], []>} : vector<2x144xbf16>, vector<144x32xbf16>, vector<2x32xf32> -> vector<2x32xf32>
    %c0_41 = arith.constant 0 : index
    %c0_42 = arith.constant 0 : index
    %47 = vector.load %arg3[%c0_41, %c0_42] : memref<1x32xf32, #tpu.memory_space<vmem>>, vector<1x32xf32>
    %48 = vector.broadcast %47 : vector<1x32xf32> to vector<2x32xf32>
    %49 = arith.addf %46, %48 : vector<2x32xf32>
    %cst_43 = arith.constant 0.000000e+00 : f32
    %50 = vector.broadcast %cst_43 : f32 to vector<2x32xf32>
    %51 = arith.maximumf %49, %50 : vector<2x32xf32>
    %52 = arith.truncf %51 : vector<2x32xf32> to vector<2x32xbf16>
    %c3_44 = arith.constant 3 : index
    %c0_45 = arith.constant 0 : index
    %c0_46 = arith.constant 0 : index
    %53 = vector.load %arg4[%c3_44, %c0_45, %c0_46] : memref<9x32x128xbf16, #tpu.memory_space<vmem>>, vector<1x32x128xbf16>
    %54 = vector.shape_cast %53 : vector<1x32x128xbf16> to vector<32x128xbf16>
    %cst_47 = arith.constant dense<0.000000e+00> : vector<2x128xf32>
    %55 = tpu.matmul %52, %54, %cst_47 {dimension_numbers = #tpu.dot_dimension_numbers<[1], [0], [0], [1], [0, 0, 1, 1], [], []>} : vector<2x32xbf16>, vector<32x128xbf16>, vector<2x128xf32> -> vector<2x128xf32>
    %56 = arith.addf %42, %55 : vector<2x128xf32>
    %c4 = arith.constant 4 : index
    %c0_48 = arith.constant 0 : index
    %c0_49 = arith.constant 0 : index
    %57 = vector.load %arg1[%c4, %c0_48, %c0_49] : memref<9x2x144xbf16, #tpu.memory_space<vmem>>, vector<1x2x144xbf16>
    %58 = vector.shape_cast %57 : vector<1x2x144xbf16> to vector<2x144xbf16>
    %c0_50 = arith.constant 0 : index
    %c0_51 = arith.constant 0 : index
    %59 = vector.load %arg2[%c0_50, %c0_51] : memref<144x32xbf16, #tpu.memory_space<vmem>>, vector<144x32xbf16>
    %cst_52 = arith.constant dense<0.000000e+00> : vector<2x32xf32>
    %60 = tpu.matmul %58, %59, %cst_52 {dimension_numbers = #tpu.dot_dimension_numbers<[1], [0], [0], [1], [0, 0, 1, 1], [], []>} : vector<2x144xbf16>, vector<144x32xbf16>, vector<2x32xf32> -> vector<2x32xf32>
    %c0_53 = arith.constant 0 : index
    %c0_54 = arith.constant 0 : index
    %61 = vector.load %arg3[%c0_53, %c0_54] : memref<1x32xf32, #tpu.memory_space<vmem>>, vector<1x32xf32>
    %62 = vector.broadcast %61 : vector<1x32xf32> to vector<2x32xf32>
    %63 = arith.addf %60, %62 : vector<2x32xf32>
    %cst_55 = arith.constant 0.000000e+00 : f32
    %64 = vector.broadcast %cst_55 : f32 to vector<2x32xf32>
    %65 = arith.maximumf %63, %64 : vector<2x32xf32>
    %66 = arith.truncf %65 : vector<2x32xf32> to vector<2x32xbf16>
    %c4_56 = arith.constant 4 : index
    %c0_57 = arith.constant 0 : index
    %c0_58 = arith.constant 0 : index
    %67 = vector.load %arg4[%c4_56, %c0_57, %c0_58] : memref<9x32x128xbf16, #tpu.memory_space<vmem>>, vector<1x32x128xbf16>
    %68 = vector.shape_cast %67 : vector<1x32x128xbf16> to vector<32x128xbf16>
    %cst_59 = arith.constant dense<0.000000e+00> : vector<2x128xf32>
    %69 = tpu.matmul %66, %68, %cst_59 {dimension_numbers = #tpu.dot_dimension_numbers<[1], [0], [0], [1], [0, 0, 1, 1], [], []>} : vector<2x32xbf16>, vector<32x128xbf16>, vector<2x128xf32> -> vector<2x128xf32>
    %70 = arith.addf %56, %69 : vector<2x128xf32>
    %c5 = arith.constant 5 : index
    %c0_60 = arith.constant 0 : index
    %c0_61 = arith.constant 0 : index
    %71 = vector.load %arg1[%c5, %c0_60, %c0_61] : memref<9x2x144xbf16, #tpu.memory_space<vmem>>, vector<1x2x144xbf16>
    %72 = vector.shape_cast %71 : vector<1x2x144xbf16> to vector<2x144xbf16>
    %c0_62 = arith.constant 0 : index
    %c0_63 = arith.constant 0 : index
    %73 = vector.load %arg2[%c0_62, %c0_63] : memref<144x32xbf16, #tpu.memory_space<vmem>>, vector<144x32xbf16>
    %cst_64 = arith.constant dense<0.000000e+00> : vector<2x32xf32>
    %74 = tpu.matmul %72, %73, %cst_64 {dimension_numbers = #tpu.dot_dimension_numbers<[1], [0], [0], [1], [0, 0, 1, 1], [], []>} : vector<2x144xbf16>, vector<144x32xbf16>, vector<2x32xf32> -> vector<2x32xf32>
    %c0_65 = arith.constant 0 : index
    %c0_66 = arith.constant 0 : index
    %75 = vector.load %arg3[%c0_65, %c0_66] : memref<1x32xf32, #tpu.memory_space<vmem>>, vector<1x32xf32>
    %76 = vector.broadcast %75 : vector<1x32xf32> to vector<2x32xf32>
    %77 = arith.addf %74, %76 : vector<2x32xf32>
    %cst_67 = arith.constant 0.000000e+00 : f32
    %78 = vector.broadcast %cst_67 : f32 to vector<2x32xf32>
    %79 = arith.maximumf %77, %78 : vector<2x32xf32>
    %80 = arith.truncf %79 : vector<2x32xf32> to vector<2x32xbf16>
    %c5_68 = arith.constant 5 : index
    %c0_69 = arith.constant 0 : index
    %c0_70 = arith.constant 0 : index
    %81 = vector.load %arg4[%c5_68, %c0_69, %c0_70] : memref<9x32x128xbf16, #tpu.memory_space<vmem>>, vector<1x32x128xbf16>
    %82 = vector.shape_cast %81 : vector<1x32x128xbf16> to vector<32x128xbf16>
    %cst_71 = arith.constant dense<0.000000e+00> : vector<2x128xf32>
    %83 = tpu.matmul %80, %82, %cst_71 {dimension_numbers = #tpu.dot_dimension_numbers<[1], [0], [0], [1], [0, 0, 1, 1], [], []>} : vector<2x32xbf16>, vector<32x128xbf16>, vector<2x128xf32> -> vector<2x128xf32>
    %84 = arith.addf %70, %83 : vector<2x128xf32>
    %c6 = arith.constant 6 : index
    %c0_72 = arith.constant 0 : index
    %c0_73 = arith.constant 0 : index
    %85 = vector.load %arg1[%c6, %c0_72, %c0_73] : memref<9x2x144xbf16, #tpu.memory_space<vmem>>, vector<1x2x144xbf16>
    %86 = vector.shape_cast %85 : vector<1x2x144xbf16> to vector<2x144xbf16>
    %c0_74 = arith.constant 0 : index
    %c0_75 = arith.constant 0 : index
    %87 = vector.load %arg2[%c0_74, %c0_75] : memref<144x32xbf16, #tpu.memory_space<vmem>>, vector<144x32xbf16>
    %cst_76 = arith.constant dense<0.000000e+00> : vector<2x32xf32>
    %88 = tpu.matmul %86, %87, %cst_76 {dimension_numbers = #tpu.dot_dimension_numbers<[1], [0], [0], [1], [0, 0, 1, 1], [], []>} : vector<2x144xbf16>, vector<144x32xbf16>, vector<2x32xf32> -> vector<2x32xf32>
    %c0_77 = arith.constant 0 : index
    %c0_78 = arith.constant 0 : index
    %89 = vector.load %arg3[%c0_77, %c0_78] : memref<1x32xf32, #tpu.memory_space<vmem>>, vector<1x32xf32>
    %90 = vector.broadcast %89 : vector<1x32xf32> to vector<2x32xf32>
    %91 = arith.addf %88, %90 : vector<2x32xf32>
    %cst_79 = arith.constant 0.000000e+00 : f32
    %92 = vector.broadcast %cst_79 : f32 to vector<2x32xf32>
    %93 = arith.maximumf %91, %92 : vector<2x32xf32>
    %94 = arith.truncf %93 : vector<2x32xf32> to vector<2x32xbf16>
    %c6_80 = arith.constant 6 : index
    %c0_81 = arith.constant 0 : index
    %c0_82 = arith.constant 0 : index
    %95 = vector.load %arg4[%c6_80, %c0_81, %c0_82] : memref<9x32x128xbf16, #tpu.memory_space<vmem>>, vector<1x32x128xbf16>
    %96 = vector.shape_cast %95 : vector<1x32x128xbf16> to vector<32x128xbf16>
    %cst_83 = arith.constant dense<0.000000e+00> : vector<2x128xf32>
    %97 = tpu.matmul %94, %96, %cst_83 {dimension_numbers = #tpu.dot_dimension_numbers<[1], [0], [0], [1], [0, 0, 1, 1], [], []>} : vector<2x32xbf16>, vector<32x128xbf16>, vector<2x128xf32> -> vector<2x128xf32>
    %98 = arith.addf %84, %97 : vector<2x128xf32>
    %c7 = arith.constant 7 : index
    %c0_84 = arith.constant 0 : index
    %c0_85 = arith.constant 0 : index
    %99 = vector.load %arg1[%c7, %c0_84, %c0_85] : memref<9x2x144xbf16, #tpu.memory_space<vmem>>, vector<1x2x144xbf16>
    %100 = vector.shape_cast %99 : vector<1x2x144xbf16> to vector<2x144xbf16>
    %c0_86 = arith.constant 0 : index
    %c0_87 = arith.constant 0 : index
    %101 = vector.load %arg2[%c0_86, %c0_87] : memref<144x32xbf16, #tpu.memory_space<vmem>>, vector<144x32xbf16>
    %cst_88 = arith.constant dense<0.000000e+00> : vector<2x32xf32>
    %102 = tpu.matmul %100, %101, %cst_88 {dimension_numbers = #tpu.dot_dimension_numbers<[1], [0], [0], [1], [0, 0, 1, 1], [], []>} : vector<2x144xbf16>, vector<144x32xbf16>, vector<2x32xf32> -> vector<2x32xf32>
    %c0_89 = arith.constant 0 : index
    %c0_90 = arith.constant 0 : index
    %103 = vector.load %arg3[%c0_89, %c0_90] : memref<1x32xf32, #tpu.memory_space<vmem>>, vector<1x32xf32>
    %104 = vector.broadcast %103 : vector<1x32xf32> to vector<2x32xf32>
    %105 = arith.addf %102, %104 : vector<2x32xf32>
    %cst_91 = arith.constant 0.000000e+00 : f32
    %106 = vector.broadcast %cst_91 : f32 to vector<2x32xf32>
    %107 = arith.maximumf %105, %106 : vector<2x32xf32>
    %108 = arith.truncf %107 : vector<2x32xf32> to vector<2x32xbf16>
    %c7_92 = arith.constant 7 : index
    %c0_93 = arith.constant 0 : index
    %c0_94 = arith.constant 0 : index
    %109 = vector.load %arg4[%c7_92, %c0_93, %c0_94] : memref<9x32x128xbf16, #tpu.memory_space<vmem>>, vector<1x32x128xbf16>
    %110 = vector.shape_cast %109 : vector<1x32x128xbf16> to vector<32x128xbf16>
    %cst_95 = arith.constant dense<0.000000e+00> : vector<2x128xf32>
    %111 = tpu.matmul %108, %110, %cst_95 {dimension_numbers = #tpu.dot_dimension_numbers<[1], [0], [0], [1], [0, 0, 1, 1], [], []>} : vector<2x32xbf16>, vector<32x128xbf16>, vector<2x128xf32> -> vector<2x128xf32>
    %112 = arith.addf %98, %111 : vector<2x128xf32>
    %c8 = arith.constant 8 : index
    %c0_96 = arith.constant 0 : index
    %c0_97 = arith.constant 0 : index
    %113 = vector.load %arg1[%c8, %c0_96, %c0_97] : memref<9x2x144xbf16, #tpu.memory_space<vmem>>, vector<1x2x144xbf16>
    %114 = vector.shape_cast %113 : vector<1x2x144xbf16> to vector<2x144xbf16>
    %c0_98 = arith.constant 0 : index
    %c0_99 = arith.constant 0 : index
    %115 = vector.load %arg2[%c0_98, %c0_99] : memref<144x32xbf16, #tpu.memory_space<vmem>>, vector<144x32xbf16>
    %cst_100 = arith.constant dense<0.000000e+00> : vector<2x32xf32>
    %116 = tpu.matmul %114, %115, %cst_100 {dimension_numbers = #tpu.dot_dimension_numbers<[1], [0], [0], [1], [0, 0, 1, 1], [], []>} : vector<2x144xbf16>, vector<144x32xbf16>, vector<2x32xf32> -> vector<2x32xf32>
    %c0_101 = arith.constant 0 : index
    %c0_102 = arith.constant 0 : index
    %117 = vector.load %arg3[%c0_101, %c0_102] : memref<1x32xf32, #tpu.memory_space<vmem>>, vector<1x32xf32>
    %118 = vector.broadcast %117 : vector<1x32xf32> to vector<2x32xf32>
    %119 = arith.addf %116, %118 : vector<2x32xf32>
    %cst_103 = arith.constant 0.000000e+00 : f32
    %120 = vector.broadcast %cst_103 : f32 to vector<2x32xf32>
    %121 = arith.maximumf %119, %120 : vector<2x32xf32>
    %122 = arith.truncf %121 : vector<2x32xf32> to vector<2x32xbf16>
    %c8_104 = arith.constant 8 : index
    %c0_105 = arith.constant 0 : index
    %c0_106 = arith.constant 0 : index
    %123 = vector.load %arg4[%c8_104, %c0_105, %c0_106] : memref<9x32x128xbf16, #tpu.memory_space<vmem>>, vector<1x32x128xbf16>
    %124 = vector.shape_cast %123 : vector<1x32x128xbf16> to vector<32x128xbf16>
    %cst_107 = arith.constant dense<0.000000e+00> : vector<2x128xf32>
    %125 = tpu.matmul %122, %124, %cst_107 {dimension_numbers = #tpu.dot_dimension_numbers<[1], [0], [0], [1], [0, 0, 1, 1], [], []>} : vector<2x32xbf16>, vector<32x128xbf16>, vector<2x128xf32> -> vector<2x128xf32>
    %126 = arith.addf %112, %125 : vector<2x128xf32>
    %c0_108 = arith.constant 0 : index
    %c0_109 = arith.constant 0 : index
    %127 = vector.load %arg5[%c0_108, %c0_109] : memref<1x128xf32, #tpu.memory_space<vmem>>, vector<1x128xf32>
    %128 = vector.broadcast %127 : vector<1x128xf32> to vector<2x128xf32>
    %129 = arith.addf %126, %128 : vector<2x128xf32>
    %cst_110 = arith.constant 0.000000e+00 : f32
    %130 = vector.broadcast %cst_110 : f32 to vector<2x128xf32>
    %131 = arith.maximumf %129, %130 : vector<2x128xf32>
    %132 = arith.truncf %131 : vector<2x128xf32> to vector<2x128xbf16>
    %c0_111 = arith.constant 0 : index
    %c0_112 = arith.constant 0 : index
    %133 = vector.load %arg6[%c0_111, %c0_112] : memref<128x16xbf16, #tpu.memory_space<vmem>>, vector<128x16xbf16>
    %cst_113 = arith.constant dense<0.000000e+00> : vector<2x16xf32>
    %134 = tpu.matmul %132, %133, %cst_113 {dimension_numbers = #tpu.dot_dimension_numbers<[1], [0], [0], [1], [0, 0, 1, 1], [], []>} : vector<2x128xbf16>, vector<128x16xbf16>, vector<2x16xf32> -> vector<2x16xf32>
    %c0_114 = arith.constant 0 : index
    %c0_115 = arith.constant 0 : index
    %135 = vector.load %arg7[%c0_114, %c0_115] : memref<1x16xf32, #tpu.memory_space<vmem>>, vector<1x16xf32>
    %136 = vector.broadcast %135 : vector<1x16xf32> to vector<2x16xf32>
    %137 = arith.addf %134, %136 : vector<2x16xf32>
    %c0_116 = arith.constant 0 : index
    %c0_117 = arith.constant 0 : index
    %138 = vector.load %arg8[%c0_116, %c0_117] : memref<2x16xf32, #tpu.memory_space<vmem>>, vector<2x16xf32>
    tpu.vector_store %arg8[%c0_116, %c0_117], %137 {strides = array<i32>} : memref<2x16xf32, #tpu.memory_space<vmem>>, vector<2x16xf32>,
    return
  }
  func.func @transform_0(%arg0: i32) -> (i32, i32, i32) {
    %c0_i32 = arith.constant 0 : i32
    %c0_i32_0 = arith.constant 0 : i32
    %c0_i32_1 = arith.constant 0 : i32
    %c0_i32_2 = arith.constant 0 : i32
    return %c0_i32, %c0_i32_0, %c0_i32_1 : i32, i32, i32
  }
  func.func @transform_1(%arg0: i32) -> (i32, i32) {
    %c0_i32 = arith.constant 0 : i32
    %c0_i32_0 = arith.constant 0 : i32
    %c0_i32_1 = arith.constant 0 : i32
    return %c0_i32, %c0_i32_0 : i32, i32
  }
  func.func @transform_2(%arg0: i32) -> (i32, i32) {
    %c0_i32 = arith.constant 0 : i32
    %c0_i32_0 = arith.constant 0 : i32
    %c0_i32_1 = arith.constant 0 : i32
    return %c0_i32, %c0_i32_0 : i32, i32
  }
  func.func @transform_3(%arg0: i32) -> (i32, i32, i32) {
    %c0_i32 = arith.constant 0 : i32
    %c0_i32_0 = arith.constant 0 : i32
    %c0_i32_1 = arith.constant 0 : i32
    %c0_i32_2 = arith.constant 0 : i32
    return %c0_i32, %c0_i32_0, %c0_i32_1 : i32, i32, i32
  }
  func.func @transform_4(%arg0: i32) -> (i32, i32) {
    %c0_i32 = arith.constant 0 : i32
    %c0_i32_0 = arith.constant 0 : i32
    %c0_i32_1 = arith.constant 0 : i32
    return %c0_i32, %c0_i32_0 : i32, i32
  }
  func.func @transform_5(%arg0: i32) -> (i32, i32) {
    %c0_i32 = arith.constant 0 : i32
    %c0_i32_0 = arith.constant 0 : i32
    %c0_i32_1 = arith.constant 0 : i32
    return %c0_i32, %c0_i32_0 : i32, i32
  }
  func.func @transform_6(%arg0: i32) -> (i32, i32) {
    %c0_i32 = arith.constant 0 : i32
    %c0_i32_0 = arith.constant 0 : i32
    %c0_i32_1 = arith.constant 0 : i32
    return %c0_i32, %c0_i32_0 : i32, i32
  }
  func.func @transform_7(%arg0: i32) -> (i32, i32) {
    %c0_i32 = arith.constant 0 : i32
    %c0_i32_0 = arith.constant 0 : i32
    %c0_i32_1 = arith.constant 0 : i32
    return %c0_i32, %c0_i32_0 : i32, i32
  }
}

</mosaic_0001>

<llo_original>
// kernel: _encoder_forward.3
$region0: #{_encoder_forward.3}
  #allocation0 [shape = 'u32[]', space=smem, size = 0x4, offset = 0x4, fixed_abs, tag = 'smem constant byte address 0x4 - core index']
  #allocation1 [shape = 'u32[72,128]{1,0:T(1,128)}', space=vmem, size = 0x9000, scoped, tag = 'internal scratch']
  %s0 = inlined_call_operand.vmem [shape: bf16[392,9], index: 0, kind: input, shape index: {}]
  %s1 = inlined_call_operand.vmem [shape: bf16[9,8], index: 1, kind: input, shape index: {}]
  %s2 = inlined_call_operand.vmem [shape: f32[1,8], index: 2, kind: input, shape index: {}]
  %s3 = inlined_call_operand.vmem [shape: bf16[392,8], index: 3, kind: output, shape index: {}]
  %s4 = sld [smem:[#allocation0]]
  $region22: #{_encoder_forward.3} parent=0
    _
  %s6 = ssub.s32 1, %s4
  %s7 = scalar_select 0, %s6, %s4
  // Predicated region
  $region2: #{_encoder_forward.3} parent=0 // pred_check
    _
  $region3: #{_encoder_forward.3} parent=0 // pred_check_branch
    %9 = sbr.rel (0) target = $region5
  $region4: #{_encoder_forward.3} parent=0 // pred_region
    _
  $region5: #{_encoder_forward.3} parent=0 // pred_fallthru
    _
  // Predicated region
  $region6: #{_encoder_forward.3} parent=0 // pred_check
    _
  $region7: #{_encoder_forward.3} parent=0 // pred_check_branch
    %11 = sbr.rel (0) target = $region9
  $region8: #{_encoder_forward.3} parent=0 // pred_region
    _
  $region9: #{_encoder_forward.3} parent=0 // pred_fallthru
    _
  // Predicated region
  $region10: #{_encoder_forward.3} parent=0 // pred_check
    _
  $region11: #{_encoder_forward.3} parent=0 // pred_check_branch
    %13 = sbr.rel (0) target = $region13
  $region12: #{_encoder_forward.3} parent=0 // pred_region
    _
  $region13: #{_encoder_forward.3} parent=0 // pred_fallthru
    _
  %v15 = vld [vmem:[%s0] sm:$0xf]
  %v16 = vld [vmem:[%s0 + $0x4] sm:$0xf]
  %v17 = vld [vmem:[%s0 + $0x8] sm:$0xf]
  %v18 = vld [vmem:[%s0 + $0xc] sm:$0xf]
  %v19 = vld [vmem:[%s0 + $0x10] sm:$0xf]
  %v20 = vld [vmem:[%s0 + $0x14] sm:$0xf]
  %v21 = vld [vmem:[%s0 + $0x18] sm:$0xf]
  %v22 = vld [vmem:[%s0 + $0x1c] sm:$0xf]
  %v23 = vld [vmem:[%s0 + $0x20] sm:$0xf]
  %v24 = vld [vmem:[%s0 + $0x24] sm:$0xf]
  %v25 = vld [vmem:[%s0 + $0x28] sm:$0xf]
  %v26 = vld [vmem:[%s0 + $0x2c] sm:$0xf]
  %v27 = vld [vmem:[%s0 + $0x30] sm:$0xf]
  %v28 = vld [vmem:[%s0 + $0x34] sm:$0xf]
  %v29 = vld [vmem:[%s0 + $0x38] sm:$0xf]
  %v30 = vld [vmem:[%s0 + $0x3c] sm:$0xf]
  %v31 = vld [vmem:[%s0 + $0x40] sm:$0xf]
  %v32 = vld [vmem:[%s0 + $0x44] sm:$0xf]
  %v33 = vld [vmem:[%s0 + $0x48] sm:$0xf]
  %v34 = vld [vmem:[%s0 + $0x4c] sm:$0xf]
  %v35 = vld [vmem:[%s0 + $0x50] sm:$0xf]
  %v36 = vld [vmem:[%s0 + $0x54] sm:$0xf]
  %v37 = vld [vmem:[%s0 + $0x58] sm:$0xf]
  %v38 = vld [vmem:[%s0 + $0x5c] sm:$0xf]
  %v39 = vld [vmem:[%s0 + $0x60] sm:$0xf]
  %v40 = vld [vmem:[%s0 + $0x64] sm:$0xf]
  %v41 = vld [vmem:[%s0 + $0x68] sm:$0xf]
  %v42 = vld [vmem:[%s0 + $0x6c] sm:$0xf]
  %v43 = vld [vmem:[%s0 + $0x70] sm:$0xf]
  %v44 = vld [vmem:[%s0 + $0x74] sm:$0xf]
  %v45 = vld [vmem:[%s0 + $0x78] sm:$0xf]
  %v46 = vld [vmem:[%s0 + $0x7c] sm:$0xf]
  %v47 = vld [vmem:[%s0 + $0x80] sm:$0xf]
  %v48 = vld [vmem:[%s0 + $0x84] sm:$0xf]
  %v49 = vld [vmem:[%s0 + $0x88] sm:$0xf]
  %v50 = vld [vmem:[%s0 + $0x8c] sm:$0xf]
  %v51 = vld [vmem:[%s0 + $0x90] sm:$0xf]
  %v52 = vld [vmem:[%s0 + $0x94] sm:$0xf]
  %v53 = vld [vmem:[%s0 + $0x98] sm:$0xf]
  %v54 = vld [vmem:[%s0 + $0x9c] sm:$0xf]
  %v55 = vld [vmem:[%s0 + $0xa0] sm:$0xf]
  %v56 = vld [vmem:[%s0 + $0xa4] sm:$0xf]
  %v57 = vld [vmem:[%s0 + $0xa8] sm:$0xf]
  %v58 = vld [vmem:[%s0 + $0xac] sm:$0xf]
  %v59 = vld [vmem:[%s0 + $0xb0] sm:$0xf]
  %v60 = vld [vmem:[%s0 + $0xb4] sm:$0xf]
  %v61 = vld [vmem:[%s0 + $0xb8] sm:$0xf]
  %v62 = vld [vmem:[%s0 + $0xbc] sm:$0xf]
  %v63 = vld [vmem:[%s0 + $0xc0] sm:$0xf]
  %v64 = vld [vmem:[%s1] sm:$0xf]
  %v65 = vld [vmem:[%s1 + $0x4] sm:$0x1]
  %v66 = vld [vmem:[%s2] sm:$0x1]
  %v68 = vperm.slane %v66, 0
  %v119 = vunpack.c.l.b16 %v15
  %v120 = vunpack.c.l.b16 %v16
  %v121 = vunpack.c.l.b16 %v17
  %v122 = vunpack.c.l.b16 %v18
  %v123 = vunpack.c.l.b16 %v19
  %v124 = vunpack.c.l.b16 %v20
  %v125 = vunpack.c.l.b16 %v21
  %v126 = vunpack.c.l.b16 %v22
  %v127 = vunpack.c.l.b16 %v23
  %v128 = vunpack.c.l.b16 %v24
  %v129 = vunpack.c.l.b16 %v25
  %v130 = vunpack.c.l.b16 %v26
  %v131 = vunpack.c.l.b16 %v27
  %v132 = vunpack.c.l.b16 %v28
  %v133 = vunpack.c.l.b16 %v29
  %v134 = vunpack.c.l.b16 %v30
  %v135 = vunpack.c.l.b16 %v31
  %v136 = vunpack.c.l.b16 %v32
  %v137 = vunpack.c.l.b16 %v33
  %v138 = vunpack.c.l.b16 %v34
  %v139 = vunpack.c.l.b16 %v35
  %v140 = vunpack.c.l.b16 %v36
  %v141 = vunpack.c.l.b16 %v37
  %v142 = vunpack.c.l.b16 %v38
  %v143 = vunpack.c.l.b16 %v39
  %v144 = vunpack.c.l.b16 %v40
  %v145 = vunpack.c.l.b16 %v41
  %v146 = vunpack.c.l.b16 %v42
  %v147 = vunpack.c.l.b16 %v43
  %v148 = vunpack.c.l.b16 %v44
  %v149 = vunpack.c.l.b16 %v45
  %v150 = vunpack.c.l.b16 %v46
  %v151 = vunpack.c.l.b16 %v47
  %v152 = vunpack.c.l.b16 %v48
  %v153 = vunpack.c.l.b16 %v49
  %v154 = vunpack.c.l.b16 %v50
  %v155 = vunpack.c.l.b16 %v51
  %v156 = vunpack.c.l.b16 %v52
  %v157 = vunpack.c.l.b16 %v53
  %v158 = vunpack.c.l.b16 %v54
  %v159 = vunpack.c.l.b16 %v55
  %v160 = vunpack.c.l.b16 %v56
  %v161 = vunpack.c.l.b16 %v57
  %v162 = vunpack.c.l.b16 %v58
  %v163 = vunpack.c.l.b16 %v59
  %v164 = vunpack.c.l.b16 %v60
  %v165 = vunpack.c.l.b16 %v61
  %v166 = vunpack.c.l.b16 %v62
  %v167 = vunpack.c.l.b16 %v63
  %v168 = vpack.c.b16 %v120, %v119
  %v169 = vpack.c.b16 %v122, %v121
  %v170 = vpack.c.b16 %v124, %v123
  %v171 = vpack.c.b16 %v126, %v125
  %v172 = vpack.c.b16 %v128, %v127
  %v173 = vpack.c.b16 %v130, %v129
  %v174 = vpack.c.b16 %v132, %v131
  %v175 = vpack.c.b16 %v134, %v133
  %v176 = vpack.c.b16 %v136, %v135
  %v177 = vpack.c.b16 %v138, %v137
  %v178 = vpack.c.b16 %v140, %v139
  %v179 = vpack.c.b16 %v142, %v141
  %v180 = vpack.c.b16 %v144, %v143
  %v181 = vpack.c.b16 %v146, %v145
  %v182 = vpack.c.b16 %v148, %v147
  %v183 = vpack.c.b16 %v150, %v149
  %v184 = vpack.c.b16 %v152, %v151
  %v185 = vpack.c.b16 %v154, %v153
  %v186 = vpack.c.b16 %v156, %v155
  %v187 = vpack.c.b16 %v158, %v157
  %v188 = vpack.c.b16 %v160, %v159
  %v189 = vpack.c.b16 %v162, %v161
  %v190 = vpack.c.b16 %v164, %v163
  %v191 = vpack.c.b16 %v166, %v165
  %v192 = vpack.c.b16 %v167, %v167
  %v195 = vunpack.c.l.b16 %v64
  %v196 = vunpack.c.l.b16 %v65
  %v197 = vpack.c.b16 %v196, %v195
  %vm198 = vcmask 72704
  %v200 = vsel %vm198, %v168, 0
  %v203 = vsel %vm198, %v169, 0
  %v206 = vsel %vm198, %v170, 0
  %v209 = vsel %vm198, %v171, 0
  %v212 = vsel %vm198, %v172, 0
  %v215 = vsel %vm198, %v173, 0
  %v218 = vsel %vm198, %v174, 0
  %v221 = vsel %vm198, %v175, 0
  %v224 = vsel %vm198, %v176, 0
  %v227 = vsel %vm198, %v177, 0
  %v230 = vsel %vm198, %v178, 0
  %v233 = vsel %vm198, %v179, 0
  %v236 = vsel %vm198, %v180, 0
  %v239 = vsel %vm198, %v181, 0
  %v242 = vsel %vm198, %v182, 0
  %v245 = vsel %vm198, %v183, 0
  %v248 = vsel %vm198, %v184, 0
  %v251 = vsel %vm198, %v185, 0
  %v254 = vsel %vm198, %v186, 0
  %v257 = vsel %vm198, %v187, 0
  %v260 = vsel %vm198, %v188, 0
  %v263 = vsel %vm198, %v189, 0
  %v266 = vsel %vm198, %v190, 0
  %v269 = vsel %vm198, %v191, 0
  %v272 = vsel %vm198, %v192, 0
  %vm274 = vcmask 1043456
  %vm275 = vcmask 1044480
  %v276 = vsel %vm274, 4294967295, 65535
  %v277 = vsel %vm275, %v276, 0
  %v279 = vand.u32 %v197, %v277
  %281 = vmatpush.bf16.msra.mxu0 0
  %282 = vmatpush.bf16.msra.mxu0 0
  %283 = vmatpush.bf16.msra.mxu0 0
  %284 = vmatpush.bf16.msra.mxu0 0
  %285 = vmatpush.bf16.msra.mxu0 0
  %286 = vmatpush.bf16.msra.mxu0 0
  %287 = vmatpush.bf16.msra.mxu0 0
  %288 = vmatpush.bf16.msra.mxu0 %v279
  %289 = vmatmul.bf16.gmra.mxu0 %v200
  %v290 = vpop.f32.mrf.mxu0
  %v291 = vadd.f32 %v68, %v290
  %v292 = vpop.f32.mrf.mxu0
  %v293 = vadd.f32 %v68, %v292
  %294 = vmatmul.bf16.gmra.mxu0 %v203
  %v295 = vpop.f32.mrf.mxu0
  %v296 = vadd.f32 %v68, %v295
  %v297 = vpop.f32.mrf.mxu0
  %v298 = vadd.f32 %v68, %v297
  %299 = vmatmul.bf16.gmra.mxu0 %v206
  %v300 = vpop.f32.mrf.mxu0
  %v301 = vadd.f32 %v68, %v300
  %v302 = vpop.f32.mrf.mxu0
  %v303 = vadd.f32 %v68, %v302
  %304 = vmatmul.bf16.gmra.mxu0 %v209
  %v305 = vpop.f32.mrf.mxu0
  %v306 = vadd.f32 %v68, %v305
  %v307 = vpop.f32.mrf.mxu0
  %v308 = vadd.f32 %v68, %v307
  %309 = vmatmul.bf16.gmra.mxu0 %v212
  %v310 = vpop.f32.mrf.mxu0
  %v311 = vadd.f32 %v68, %v310
  %v312 = vpop.f32.mrf.mxu0
  %v313 = vadd.f32 %v68, %v312
  %314 = vmatmul.bf16.gmra.mxu0 %v215
  %v315 = vpop.f32.mrf.mxu0
  %v316 = vadd.f32 %v68, %v315
  %v317 = vpop.f32.mrf.mxu0
  %v318 = vadd.f32 %v68, %v317
  %319 = vmatmul.bf16.gmra.mxu0 %v218
  %v320 = vpop.f32.mrf.mxu0
  %v321 = vadd.f32 %v68, %v320
  %v322 = vpop.f32.mrf.mxu0
  %v323 = vadd.f32 %v68, %v322
  %324 = vmatmul.bf16.gmra.mxu0 %v221
  %v325 = vpop.f32.mrf.mxu0
  %v326 = vadd.f32 %v68, %v325
  %v327 = vpop.f32.mrf.mxu0
  %v328 = vadd.f32 %v68, %v327
  %329 = vmatmul.bf16.gmra.mxu0 %v224
  %v330 = vpop.f32.mrf.mxu0
  %v331 = vadd.f32 %v68, %v330
  %v332 = vpop.f32.mrf.mxu0
  %v333 = vadd.f32 %v68, %v332
  %334 = vmatmul.bf16.gmra.mxu0 %v227
  %v335 = vpop.f32.mrf.mxu0
  %v336 = vadd.f32 %v68, %v335
  %v337 = vpop.f32.mrf.mxu0
  %v338 = vadd.f32 %v68, %v337
  %339 = vmatmul.bf16.gmra.mxu0 %v230
  %v340 = vpop.f32.mrf.mxu0
  %v341 = vadd.f32 %v68, %v340
  %v342 = vpop.f32.mrf.mxu0
  %v343 = vadd.f32 %v68, %v342
  %344 = vmatmul.bf16.gmra.mxu0 %v233
  %v345 = vpop.f32.mrf.mxu0
  %v346 = vadd.f32 %v68, %v345
  %v347 = vpop.f32.mrf.mxu0
  %v348 = vadd.f32 %v68, %v347
  %349 = vmatmul.bf16.gmra.mxu0 %v236
  %v350 = vpop.f32.mrf.mxu0
  %v351 = vadd.f32 %v68, %v350
  %v352 = vpop.f32.mrf.mxu0
  %v353 = vadd.f32 %v68, %v352
  %354 = vmatmul.bf16.gmra.mxu0 %v239
  %v355 = vpop.f32.mrf.mxu0
  %v356 = vadd.f32 %v68, %v355
  %v357 = vpop.f32.mrf.mxu0
  %v358 = vadd.f32 %v68, %v357
  %359 = vmatmul.bf16.gmra.mxu0 %v242
  %v360 = vpop.f32.mrf.mxu0
  %v361 = vadd.f32 %v68, %v360
  %v362 = vpop.f32.mrf.mxu0
  %v363 = vadd.f32 %v68, %v362
  %364 = vmatmul.bf16.gmra.mxu0 %v245
  %v365 = vpop.f32.mrf.mxu0
  %v366 = vadd.f32 %v68, %v365
  %v367 = vpop.f32.mrf.mxu0
  %v368 = vadd.f32 %v68, %v367
  %369 = vmatmul.bf16.gmra.mxu0 %v248
  %v370 = vpop.f32.mrf.mxu0
  %v371 = vadd.f32 %v68, %v370
  %v372 = vpop.f32.mrf.mxu0
  %v373 = vadd.f32 %v68, %v372
  %374 = vmatmul.bf16.gmra.mxu0 %v251
  %v375 = vpop.f32.mrf.mxu0
  %v376 = vadd.f32 %v68, %v375
  %v377 = vpop.f32.mrf.mxu0
  %v378 = vadd.f32 %v68, %v377
  %379 = vmatmul.bf16.gmra.mxu0 %v254
  %v380 = vpop.f32.mrf.mxu0
  %v381 = vadd.f32 %v68, %v380
  %v382 = vpop.f32.mrf.mxu0
  %v383 = vadd.f32 %v68, %v382
  %384 = vmatmul.bf16.gmra.mxu0 %v257
  %v385 = vpop.f32.mrf.mxu0
  %v386 = vadd.f32 %v68, %v385
  %v387 = vpop.f32.mrf.mxu0
  %v388 = vadd.f32 %v68, %v387
  %389 = vmatmul.bf16.gmra.mxu0 %v260
  %v390 = vpop.f32.mrf.mxu0
  %v391 = vadd.f32 %v68, %v390
  %v392 = vpop.f32.mrf.mxu0
  %v393 = vadd.f32 %v68, %v392
  %394 = vmatmul.bf16.gmra.mxu0 %v263
  %v395 = vpop.f32.mrf.mxu0
  %v396 = vadd.f32 %v68, %v395
  %v397 = vpop.f32.mrf.mxu0
  %v398 = vadd.f32 %v68, %v397
  %399 = vmatmul.bf16.gmra.mxu0 %v266
  %v400 = vpop.f32.mrf.mxu0
  %v401 = vadd.f32 %v68, %v400
  %v402 = vpop.f32.mrf.mxu0
  %v403 = vadd.f32 %v68, %v402
  %404 = vmatmul.bf16.gmra.mxu0 %v269
  %v405 = vpop.f32.mrf.mxu0
  %v406 = vadd.f32 %v68, %v405
  %v407 = vpop.f32.mrf.mxu0
  %v408 = vadd.f32 %v68, %v407
  %409 = vmatmul.bf16.gmra.mxu0 %v272
  %v410 = vpop.f32.mrf.mxu0
  %v411 = vadd.f32 %v68, %v410
  %v412 = vpop.f32.mrf.mxu0
  %413 = vdwg.mxu0
  %v414 = vmax.f32 %v291, 0.0
  %v415 = vmax.f32 %v293, 0.0
  %v416 = vmax.f32 %v296, 0.0
  %v417 = vmax.f32 %v298, 0.0
  %v418 = vmax.f32 %v301, 0.0
  %v419 = vmax.f32 %v303, 0.0
  %v420 = vmax.f32 %v306, 0.0
  %v421 = vmax.f32 %v308, 0.0
  %v422 = vmax.f32 %v311, 0.0
  %v423 = vmax.f32 %v313, 0.0
  %v424 = vmax.f32 %v316, 0.0
  %v425 = vmax.f32 %v318, 0.0
  %v426 = vmax.f32 %v321, 0.0
  %v427 = vmax.f32 %v323, 0.0
  %v428 = vmax.f32 %v326, 0.0
  %v429 = vmax.f32 %v328, 0.0
  %v430 = vmax.f32 %v331, 0.0
  %v431 = vmax.f32 %v333, 0.0
  %v432 = vmax.f32 %v336, 0.0
  %v433 = vmax.f32 %v338, 0.0
  %v434 = vmax.f32 %v341, 0.0
  %v435 = vmax.f32 %v343, 0.0
  %v436 = vmax.f32 %v346, 0.0
  %v437 = vmax.f32 %v348, 0.0
  %v438 = vmax.f32 %v351, 0.0
  %v439 = vmax.f32 %v353, 0.0
  %v440 = vmax.f32 %v356, 0.0
  %v441 = vmax.f32 %v358, 0.0
  %v442 = vmax.f32 %v361, 0.0
  %v443 = vmax.f32 %v363, 0.0
  %v444 = vmax.f32 %v366, 0.0
  %v445 = vmax.f32 %v368, 0.0
  %v446 = vmax.f32 %v371, 0.0
  %v447 = vmax.f32 %v373, 0.0
  %v448 = vmax.f32 %v376, 0.0
  %v449 = vmax.f32 %v378, 0.0
  %v450 = vmax.f32 %v381, 0.0
  %v451 = vmax.f32 %v383, 0.0
  %v452 = vmax.f32 %v386, 0.0
  %v453 = vmax.f32 %v388, 0.0
  %v454 = vmax.f32 %v391, 0.0
  %v455 = vmax.f32 %v393, 0.0
  %v456 = vmax.f32 %v396, 0.0
  %v457 = vmax.f32 %v398, 0.0
  %v458 = vmax.f32 %v401, 0.0
  %v459 = vmax.f32 %v403, 0.0
  %v460 = vmax.f32 %v406, 0.0
  %v461 = vmax.f32 %v408, 0.0
  %v462 = vmax.f32 %v411, 0.0
  %v463 = vpack.c.bf16 %v414, %v414
  %v464 = vpack.c.bf16 %v415, %v415
  %v465 = vpack.c.bf16 %v416, %v416
  %v466 = vpack.c.bf16 %v417, %v417
  %v467 = vpack.c.bf16 %v418, %v418
  %v468 = vpack.c.bf16 %v419, %v419
  %v469 = vpack.c.bf16 %v420, %v420
  %v470 = vpack.c.bf16 %v421, %v421
  %v471 = vpack.c.bf16 %v422, %v422
  %v472 = vpack.c.bf16 %v423, %v423
  %v473 = vpack.c.bf16 %v424, %v424
  %v474 = vpack.c.bf16 %v425, %v425
  %v475 = vpack.c.bf16 %v426, %v426
  %v476 = vpack.c.bf16 %v427, %v427
  %v477 = vpack.c.bf16 %v428, %v428
  %v478 = vpack.c.bf16 %v429, %v429
  %v479 = vpack.c.bf16 %v430, %v430
  %v480 = vpack.c.bf16 %v431, %v431
  %v481 = vpack.c.bf16 %v432, %v432
  %v482 = vpack.c.bf16 %v433, %v433
  %v483 = vpack.c.bf16 %v434, %v434
  %v484 = vpack.c.bf16 %v435, %v435
  %v485 = vpack.c.bf16 %v436, %v436
  %v486 = vpack.c.bf16 %v437, %v437
  %v487 = vpack.c.bf16 %v438, %v438
  %v488 = vpack.c.bf16 %v439, %v439
  %v489 = vpack.c.bf16 %v440, %v440
  %v490 = vpack.c.bf16 %v441, %v441
  %v491 = vpack.c.bf16 %v442, %v442
  %v492 = vpack.c.bf16 %v443, %v443
  %v493 = vpack.c.bf16 %v444, %v444
  %v494 = vpack.c.bf16 %v445, %v445
  %v495 = vpack.c.bf16 %v446, %v446
  %v496 = vpack.c.bf16 %v447, %v447
  %v497 = vpack.c.bf16 %v448, %v448
  %v498 = vpack.c.bf16 %v449, %v449
  %v499 = vpack.c.bf16 %v450, %v450
  %v500 = vpack.c.bf16 %v451, %v451
  %v501 = vpack.c.bf16 %v452, %v452
  %v502 = vpack.c.bf16 %v453, %v453
  %v503 = vpack.c.bf16 %v454, %v454
  %v504 = vpack.c.bf16 %v455, %v455
  %v505 = vpack.c.bf16 %v456, %v456
  %v506 = vpack.c.bf16 %v457, %v457
  %v507 = vpack.c.bf16 %v458, %v458
  %v508 = vpack.c.bf16 %v459, %v459
  %v509 = vpack.c.bf16 %v460, %v460
  %v510 = vpack.c.bf16 %v461, %v461
  %v511 = vpack.c.bf16 %v462, %v462
  %vm512 = vcmask 60416
  %513 = vst.msk [vmem:[%s3] sm:$0xf] %vm512, %v463
  %514 = vst.msk [vmem:[%s3 + $0x4] sm:$0xf] %vm512, %v464
  %515 = vst.msk [vmem:[%s3 + $0x8] sm:$0xf] %vm512, %v465
  %516 = vst.msk [vmem:[%s3 + $0xc] sm:$0xf] %vm512, %v466
  %517 = vst.msk [vmem:[%s3 + $0x10] sm:$0xf] %vm512, %v467
  %518 = vst.msk [vmem:[%s3 + $0x14] sm:$0xf] %vm512, %v468
  %519 = vst.msk [vmem:[%s3 + $0x18] sm:$0xf] %vm512, %v469
  %520 = vst.msk [vmem:[%s3 + $0x1c] sm:$0xf] %vm512, %v470
  %521 = vst.msk [vmem:[%s3 + $0x20] sm:$0xf] %vm512, %v471
  %522 = vst.msk [vmem:[%s3 + $0x24] sm:$0xf] %vm512, %v472
  %523 = vst.msk [vmem:[%s3 + $0x28] sm:$0xf] %vm512, %v473
  %524 = vst.msk [vmem:[%s3 + $0x2c] sm:$0xf] %vm512, %v474
  %525 = vst.msk [vmem:[%s3 + $0x30] sm:$0xf] %vm512, %v475
  %526 = vst.msk [vmem:[%s3 + $0x34] sm:$0xf] %vm512, %v476
  %527 = vst.msk [vmem:[%s3 + $0x38] sm:$0xf] %vm512, %v477
  %528 = vst.msk [vmem:[%s3 + $0x3c] sm:$0xf] %vm512, %v478
  %529 = vst.msk [vmem:[%s3 + $0x40] sm:$0xf] %vm512, %v479
  %530 = vst.msk [vmem:[%s3 + $0x44] sm:$0xf] %vm512, %v480
  %531 = vst.msk [vmem:[%s3 + $0x48] sm:$0xf] %vm512, %v481
  %532 = vst.msk [vmem:[%s3 + $0x4c] sm:$0xf] %vm512, %v482
  %533 = vst.msk [vmem:[%s3 + $0x50] sm:$0xf] %vm512, %v483
  %534 = vst.msk [vmem:[%s3 + $0x54] sm:$0xf] %vm512, %v484
  %535 = vst.msk [vmem:[%s3 + $0x58] sm:$0xf] %vm512, %v485
  %536 = vst.msk [vmem:[%s3 + $0x5c] sm:$0xf] %vm512, %v486
  %537 = vst.msk [vmem:[%s3 + $0x60] sm:$0xf] %vm512, %v487
  %538 = vst.msk [vmem:[%s3 + $0x64] sm:$0xf] %vm512, %v488
  %539 = vst.msk [vmem:[%s3 + $0x68] sm:$0xf] %vm512, %v489
  %540 = vst.msk [vmem:[%s3 + $0x6c] sm:$0xf] %vm512, %v490
  %541 = vst.msk [vmem:[%s3 + $0x70] sm:$0xf] %vm512, %v491
  %542 = vst.msk [vmem:[%s3 + $0x74] sm:$0xf] %vm512, %v492
  %543 = vst.msk [vmem:[%s3 + $0x78] sm:$0xf] %vm512, %v493
  %544 = vst.msk [vmem:[%s3 + $0x7c] sm:$0xf] %vm512, %v494
  %545 = vst.msk [vmem:[%s3 + $0x80] sm:$0xf] %vm512, %v495
  %546 = vst.msk [vmem:[%s3 + $0x84] sm:$0xf] %vm512, %v496
  %547 = vst.msk [vmem:[%s3 + $0x88] sm:$0xf] %vm512, %v497
  %548 = vst.msk [vmem:[%s3 + $0x8c] sm:$0xf] %vm512, %v498
  %549 = vst.msk [vmem:[%s3 + $0x90] sm:$0xf] %vm512, %v499
  %550 = vst.msk [vmem:[%s3 + $0x94] sm:$0xf] %vm512, %v500
  %551 = vst.msk [vmem:[%s3 + $0x98] sm:$0xf] %vm512, %v501
  %552 = vst.msk [vmem:[%s3 + $0x9c] sm:$0xf] %vm512, %v502
  %553 = vst.msk [vmem:[%s3 + $0xa0] sm:$0xf] %vm512, %v503
  %554 = vst.msk [vmem:[%s3 + $0xa4] sm:$0xf] %vm512, %v504
  %555 = vst.msk [vmem:[%s3 + $0xa8] sm:$0xf] %vm512, %v505
  %556 = vst.msk [vmem:[%s3 + $0xac] sm:$0xf] %vm512, %v506
  %557 = vst.msk [vmem:[%s3 + $0xb0] sm:$0xf] %vm512, %v507
  %558 = vst.msk [vmem:[%s3 + $0xb4] sm:$0xf] %vm512, %v508
  %559 = vst.msk [vmem:[%s3 + $0xb8] sm:$0xf] %vm512, %v509
  %560 = vst.msk [vmem:[%s3 + $0xbc] sm:$0xf] %vm512, %v510
  %561 = vst.msk [vmem:[%s3 + $0xc0] sm:$0xf] %vm512, %v511
  // Predicated region
  $region14: #{_encoder_forward.3} parent=0 // pred_check
    _
  $region15: #{_encoder_forward.3} parent=0 // pred_check_branch
    %563 = sbr.rel (0) target = $region17
  $region16: #{_encoder_forward.3} parent=0 // pred_region
    _
  $region17: #{_encoder_forward.3} parent=0 // pred_fallthru
    _
  // Predicated region
  $region18: #{_encoder_forward.3} parent=0 // pred_check
    _
  $region19: #{_encoder_forward.3} parent=0 // pred_check_branch
    %565 = sbr.rel (0) target = $region21
  $region20: #{_encoder_forward.3} parent=0 // pred_region
    _
  $region21: #{_encoder_forward.3} parent=0 // pred_fallthru
    _

// kernel: _encoder_forward.4
$region0: #{_encoder_forward.4}
  #allocation0 [shape = 'u32[]', space=smem, size = 0x4, offset = 0x4, fixed_abs, tag = 'smem constant byte address 0x4 - core index']
  #allocation1 [shape = 'u32[72,128]{1,0:T(1,128)}', space=vmem, size = 0x9000, scoped, tag = 'internal scratch']
  %s0 = inlined_call_operand.vmem [shape: bf16[98,72], index: 0, kind: input, shape index: {}]
  %s1 = inlined_call_operand.vmem [shape: bf16[72,16], index: 1, kind: input, shape index: {}]
  %s2 = inlined_call_operand.vmem [shape: f32[1,16], index: 2, kind: input, shape index: {}]
  %s3 = inlined_call_operand.vmem [shape: f32[1,16], index: 3, kind: input, shape index: {}]
  %s4 = inlined_call_operand.vmem [shape: f32[1,16], index: 4, kind: input, shape index: {}]
  %s5 = inlined_call_operand.vmem [shape: bf16[98,16], index: 5, kind: output, shape index: {}]
  %s6 = sld [smem:[#allocation0]]
  $region30: #{_encoder_forward.4} parent=0
    _
  %s8 = ssub.s32 1, %s6
  %s9 = scalar_select 0, %s8, %s6
  // Predicated region
  $region2: #{_encoder_forward.4} parent=0 // pred_check
    _
  $region3: #{_encoder_forward.4} parent=0 // pred_check_branch
    %11 = sbr.rel (0) target = $region5
  $region4: #{_encoder_forward.4} parent=0 // pred_region
    _
  $region5: #{_encoder_forward.4} parent=0 // pred_fallthru
    _
  // Predicated region
  $region6: #{_encoder_forward.4} parent=0 // pred_check
    _
  $region7: #{_encoder_forward.4} parent=0 // pred_check_branch
    %13 = sbr.rel (0) target = $region9
  $region8: #{_encoder_forward.4} parent=0 // pred_region
    _
  $region9: #{_encoder_forward.4} parent=0 // pred_fallthru
    _
  // Predicated region
  $region10: #{_encoder_forward.4} parent=0 // pred_check
    _
  $region11: #{_encoder_forward.4} parent=0 // pred_check_branch
    %15 = sbr.rel (0) target = $region13
  $region12: #{_encoder_forward.4} parent=0 // pred_region
    _
  $region13: #{_encoder_forward.4} parent=0 // pred_fallthru
    _
  // Predicated region
  $region14: #{_encoder_forward.4} parent=0 // pred_check
    _
  $region15: #{_encoder_forward.4} parent=0 // pred_check_branch
    %17 = sbr.rel (0) target = $region17
  $region16: #{_encoder_forward.4} parent=0 // pred_region
    _
  $region17: #{_encoder_forward.4} parent=0 // pred_fallthru
    _
  // Predicated region
  $region18: #{_encoder_forward.4} parent=0 // pred_check
    _
  $region19: #{_encoder_forward.4} parent=0 // pred_check_branch
    %19 = sbr.rel (0) target = $region21
  $region20: #{_encoder_forward.4} parent=0 // pred_region
    _
  $region21: #{_encoder_forward.4} parent=0 // pred_fallthru
    _
  %v21 = vld [vmem:[%s0] sm:$0xf]
  %v22 = vld [vmem:[%s0 + $0x4] sm:$0xf]
  %v23 = vld [vmem:[%s0 + $0x8] sm:$0xf]
  %v24 = vld [vmem:[%s0 + $0xc] sm:$0xf]
  %v25 = vld [vmem:[%s0 + $0x10] sm:$0xf]
  %v26 = vld [vmem:[%s0 + $0x14] sm:$0xf]
  %v27 = vld [vmem:[%s0 + $0x18] sm:$0xf]
  %v28 = vld [vmem:[%s0 + $0x1c] sm:$0xf]
  %v29 = vld [vmem:[%s0 + $0x20] sm:$0xf]
  %v30 = vld [vmem:[%s0 + $0x24] sm:$0xf]
  %v31 = vld [vmem:[%s0 + $0x28] sm:$0xf]
  %v32 = vld [vmem:[%s0 + $0x2c] sm:$0xf]
  %v33 = vld [vmem:[%s0 + $0x30] sm:$0x1]
  %v34 = vld [vmem:[%s1] sm:$0xf]
  %v35 = vld [vmem:[%s1 + $0x4] sm:$0xf]
  %v36 = vld [vmem:[%s1 + $0x8] sm:$0xf]
  %v37 = vld [vmem:[%s1 + $0xc] sm:$0xf]
  %v38 = vld [vmem:[%s1 + $0x10] sm:$0xf]
  %v39 = vld [vmem:[%s1 + $0x14] sm:$0xf]
  %v40 = vld [vmem:[%s1 + $0x18] sm:$0xf]
  %v41 = vld [vmem:[%s1 + $0x1c] sm:$0xf]
  %v42 = vld [vmem:[%s1 + $0x20] sm:$0xf]
  %v43 = vld [vmem:[%s2] sm:$0x1]
  %v45 = vperm.slane %v43, 0
  %v60 = vunpack.c.l.b16 %v21
  %v61 = vunpack.c.l.b16 %v22
  %v62 = vunpack.c.l.b16 %v23
  %v63 = vunpack.c.l.b16 %v24
  %v64 = vunpack.c.l.b16 %v25
  %v65 = vunpack.c.l.b16 %v26
  %v66 = vunpack.c.l.b16 %v27
  %v67 = vunpack.c.l.b16 %v28
  %v68 = vunpack.c.l.b16 %v29
  %v69 = vunpack.c.l.b16 %v30
  %v70 = vunpack.c.l.b16 %v31
  %v71 = vunpack.c.l.b16 %v32
  %v72 = vunpack.c.l.b16 %v33
  %v73 = vpack.c.b16 %v61, %v60
  %v74 = vpack.c.b16 %v63, %v62
  %v75 = vpack.c.b16 %v65, %v64
  %v76 = vpack.c.b16 %v67, %v66
  %v77 = vpack.c.b16 %v69, %v68
  %v78 = vpack.c.b16 %v71, %v70
  %v79 = vpack.c.b16 %v72, %v72
  %v89 = vunpack.c.l.b16 %v34
  %v90 = vunpack.c.l.b16 %v35
  %v91 = vunpack.c.l.b16 %v36
  %v92 = vunpack.c.l.b16 %v37
  %v93 = vunpack.c.l.b16 %v38
  %v94 = vunpack.c.l.b16 %v39
  %v95 = vunpack.c.l.b16 %v40
  %v96 = vunpack.c.l.b16 %v41
  %v97 = vunpack.c.l.b16 %v42
  %v98 = vpack.c.b16 %v90, %v89
  %v99 = vpack.c.b16 %v92, %v91
  %v100 = vpack.c.b16 %v94, %v93
  %v101 = vpack.c.b16 %v96, %v95
  %v102 = vpack.c.b16 %v97, %v97
  %vm107 = vcmask 588800
  %v109 = vsel %vm107, %v73, 0
  %v112 = vsel %vm107, %v74, 0
  %v115 = vsel %vm107, %v75, 0
  %v118 = vsel %vm107, %v76, 0
  %v121 = vsel %vm107, %v77, 0
  %v124 = vsel %vm107, %v78, 0
  %v127 = vsel %vm107, %v79, 0
  %vm129 = vcmask 1043456
  %v131 = vsel %vm129, %v102, 0
  %133 = vmatpush.bf16.msra.mxu0 0
  %134 = vmatpush.bf16.msra.mxu0 0
  %135 = vmatpush.bf16.msra.mxu0 0
  %136 = vmatpush.bf16.msra.mxu0 %v131
  %137 = vmatpush.bf16.msra.mxu0 %v101
  %138 = vmatpush.bf16.msra.mxu0 %v100
  %139 = vmatpush.bf16.msra.mxu0 %v99
  %140 = vmatpush.bf16.msra.mxu0 %v98
  %141 = vmatmul.bf16.gmra.mxu0 %v109
  %v142 = vpop.f32.mrf.mxu0
  %v143 = vadd.f32 %v45, %v142
  %v144 = vpop.f32.mrf.mxu0
  %v145 = vadd.f32 %v45, %v144
  %146 = vmatmul.bf16.gmra.mxu0 %v112
  %v147 = vpop.f32.mrf.mxu0
  %v148 = vadd.f32 %v45, %v147
  %v149 = vpop.f32.mrf.mxu0
  %v150 = vadd.f32 %v45, %v149
  %151 = vmatmul.bf16.gmra.mxu0 %v115
  %v152 = vpop.f32.mrf.mxu0
  %v153 = vadd.f32 %v45, %v152
  %v154 = vpop.f32.mrf.mxu0
  %v155 = vadd.f32 %v45, %v154
  %156 = vmatmul.bf16.gmra.mxu0 %v118
  %v157 = vpop.f32.mrf.mxu0
  %v158 = vadd.f32 %v45, %v157
  %v159 = vpop.f32.mrf.mxu0
  %v160 = vadd.f32 %v45, %v159
  %161 = vmatmul.bf16.gmra.mxu0 %v121
  %v162 = vpop.f32.mrf.mxu0
  %v163 = vadd.f32 %v45, %v162
  %v164 = vpop.f32.mrf.mxu0
  %v165 = vadd.f32 %v45, %v164
  %166 = vmatmul.bf16.gmra.mxu0 %v124
  %v167 = vpop.f32.mrf.mxu0
  %v168 = vadd.f32 %v45, %v167
  %v169 = vpop.f32.mrf.mxu0
  %v170 = vadd.f32 %v45, %v169
  %171 = vmatmul.bf16.gmra.mxu0 %v127
  %v172 = vpop.f32.mrf.mxu0
  %v173 = vadd.f32 %v45, %v172
  %v174 = vpop.f32.mrf.mxu0
  %175 = vdwg.mxu0
  %vm176 = vcmask 130048
  %v177 = vsel %vm176, %v143, 0.0
  %v178 = vsel %vm176, %v145, 0.0
  %v179 = vadd.f32 %v177, %v178
  %v180 = vsel %vm176, %v148, 0.0
  %v181 = vadd.f32 %v179, %v180
  %v182 = vsel %vm176, %v150, 0.0
  %v183 = vadd.f32 %v181, %v182
  %v184 = vsel %vm176, %v153, 0.0
  %v185 = vadd.f32 %v183, %v184
  %v186 = vsel %vm176, %v155, 0.0
  %v187 = vadd.f32 %v185, %v186
  %v188 = vsel %vm176, %v158, 0.0
  %v189 = vadd.f32 %v187, %v188
  %v190 = vsel %vm176, %v160, 0.0
  %v191 = vadd.f32 %v189, %v190
  %v192 = vsel %vm176, %v163, 0.0
  %v193 = vadd.f32 %v191, %v192
  %v194 = vsel %vm176, %v165, 0.0
  %v195 = vadd.f32 %v193, %v194
  %v196 = vsel %vm176, %v168, 0.0
  %v197 = vadd.f32 %v195, %v196
  %v198 = vsel %vm176, %v170, 0.0
  %v199 = vadd.f32 %v197, %v198
  %vm200 = vcmask 123904
  %v201 = vsel %vm200, %v173, 0.0
  %v202 = vadd.f32 %v199, %v201
  %v203 = vrot.slane %v202, 4
  %v204 = vadd.f32 %v202, %v203
  %v205 = vrot.slane %v204, 2
  %v206 = vadd.f32 %v204, %v205
  %v207 = vrot.slane %v206, 1
  %v208 = vadd.f32 %v206, %v207
  %v209 = vrcp.pop 98.0
  %v210 = vmul.f32 98.0, %v209
  %v211 = vsub.f32 1.0, %v210
  %v212 = vmul.f32 %v209, %v211
  %v213 = vadd.f32 %v209, %v212
  %vm214 = vweird.f32 %v209
  %v215 = vsel %vm214, %v209, %v213
  %v216 = vmul.f32 %v208, %v215
  %v217 = vsub.f32 %v143, %v216
  %v218 = vsub.f32 %v145, %v216
  %v219 = vsub.f32 %v148, %v216
  %v220 = vsub.f32 %v150, %v216
  %v221 = vsub.f32 %v153, %v216
  %v222 = vsub.f32 %v155, %v216
  %v223 = vsub.f32 %v158, %v216
  %v224 = vsub.f32 %v160, %v216
  %v225 = vsub.f32 %v163, %v216
  %v226 = vsub.f32 %v165, %v216
  %v227 = vsub.f32 %v168, %v216
  %v228 = vsub.f32 %v170, %v216
  %v229 = vsub.f32 %v173, %v216
  %v230 = vmul.f32 %v217, %v217
  %v231 = vmul.f32 %v218, %v218
  %v232 = vmul.f32 %v219, %v219
  %v233 = vmul.f32 %v220, %v220
  %v234 = vmul.f32 %v221, %v221
  %v235 = vmul.f32 %v222, %v222
  %v236 = vmul.f32 %v223, %v223
  %v237 = vmul.f32 %v224, %v224
  %v238 = vmul.f32 %v225, %v225
  %v239 = vmul.f32 %v226, %v226
  %v240 = vmul.f32 %v227, %v227
  %v241 = vmul.f32 %v228, %v228
  %v242 = vmul.f32 %v229, %v229
  %v243 = vsel %vm176, %v230, 0.0
  %v244 = vsel %vm176, %v231, 0.0
  %v245 = vadd.f32 %v243, %v244
  %v246 = vsel %vm176, %v232, 0.0
  %v247 = vadd.f32 %v245, %v246
  %v248 = vsel %vm176, %v233, 0.0
  %v249 = vadd.f32 %v247, %v248
  %v250 = vsel %vm176, %v234, 0.0
  %v251 = vadd.f32 %v249, %v250
  %v252 = vsel %vm176, %v235, 0.0
  %v253 = vadd.f32 %v251, %v252
  %v254 = vsel %vm176, %v236, 0.0
  %v255 = vadd.f32 %v253, %v254
  %v256 = vsel %vm176, %v237, 0.0
  %v257 = vadd.f32 %v255, %v256
  %v258 = vsel %vm176, %v238, 0.0
  %v259 = vadd.f32 %v257, %v258
  %v260 = vsel %vm176, %v239, 0.0
  %v261 = vadd.f32 %v259, %v260
  %v262 = vsel %vm176, %v240, 0.0
  %v263 = vadd.f32 %v261, %v262
  %v264 = vsel %vm176, %v241, 0.0
  %v265 = vadd.f32 %v263, %v264
  %v266 = vsel %vm200, %v242, 0.0
  %v267 = vadd.f32 %v265, %v266
  %v268 = vrot.slane %v267, 4
  %v269 = vadd.f32 %v267, %v268
  %v270 = vrot.slane %v269, 2
  %v271 = vadd.f32 %v269, %v270
  %v272 = vrot.slane %v271, 1
  %v273 = vadd.f32 %v271, %v272
  %v274 = vmul.f32 %v273, %v215
  %v275 = vadd.f32 %v274, 1e-05
  %v276 = vrsqrt.pop %v275
  %v277 = vmul.f32 %v276, %v275
  %v278 = vmul.f32 %v277, %v276
  %v279 = vmul.f32 0.5, %v278
  %v280 = vsub.f32 1.5, %v279
  %v281 = vmul.f32 %v276, %v280
  %vm282 = vweird.f32 %v275
  %vm283 = vweird.f32 %v276
  %vm284 = vmor %vm282, %vm283
  %v285 = vsel %vm284, %v276, %v281
  %v286 = vmul.f32 %v217, %v285
  %v287 = vmul.f32 %v218, %v285
  %v288 = vmul.f32 %v219, %v285
  %v289 = vmul.f32 %v220, %v285
  %v290 = vmul.f32 %v221, %v285
  %v291 = vmul.f32 %v222, %v285
  %v292 = vmul.f32 %v223, %v285
  %v293 = vmul.f32 %v224, %v285
  %v294 = vmul.f32 %v225, %v285
  %v295 = vmul.f32 %v226, %v285
  %v296 = vmul.f32 %v227, %v285
  %v297 = vmul.f32 %v228, %v285
  %v298 = vmul.f32 %v229, %v285
  %v299 = vld [vmem:[%s3] sm:$0x1]
  %v301 = vperm.slane %v299, 0
  %v303 = vmul.f32 %v286, %v301
  %v304 = vmul.f32 %v287, %v301
  %v305 = vmul.f32 %v288, %v301
  %v306 = vmul.f32 %v289, %v301
  %v307 = vmul.f32 %v290, %v301
  %v308 = vmul.f32 %v291, %v301
  %v309 = vmul.f32 %v292, %v301
  %v310 = vmul.f32 %v293, %v301
  %v311 = vmul.f32 %v294, %v301
  %v312 = vmul.f32 %v295, %v301
  %v313 = vmul.f32 %v296, %v301
  %v314 = vmul.f32 %v297, %v301
  %v315 = vmul.f32 %v298, %v301
  %v316 = vld [vmem:[%s4] sm:$0x1]
  %v318 = vperm.slane %v316, 0
  %v320 = vadd.f32 %v303, %v318
  %v321 = vadd.f32 %v304, %v318
  %v322 = vadd.f32 %v305, %v318
  %v323 = vadd.f32 %v306, %v318
  %v324 = vadd.f32 %v307, %v318
  %v325 = vadd.f32 %v308, %v318
  %v326 = vadd.f32 %v309, %v318
  %v327 = vadd.f32 %v310, %v318
  %v328 = vadd.f32 %v311, %v318
  %v329 = vadd.f32 %v312, %v318
  %v330 = vadd.f32 %v313, %v318
  %v331 = vadd.f32 %v314, %v318
  %v332 = vadd.f32 %v315, %v318
  %v333 = vmax.f32 %v320, 0.0
  %v334 = vmax.f32 %v321, 0.0
  %v335 = vmax.f32 %v322, 0.0
  %v336 = vmax.f32 %v323, 0.0
  %v337 = vmax.f32 %v324, 0.0
  %v338 = vmax.f32 %v325, 0.0
  %v339 = vmax.f32 %v326, 0.0
  %v340 = vmax.f32 %v327, 0.0
  %v341 = vmax.f32 %v328, 0.0
  %v342 = vmax.f32 %v329, 0.0
  %v343 = vmax.f32 %v330, 0.0
  %v344 = vmax.f32 %v331, 0.0
  %v345 = vmax.f32 %v332, 0.0
  %v346 = vpack.c.bf16 %v333, %v333
  %v347 = vpack.c.bf16 %v334, %v334
  %v348 = vpack.c.bf16 %v335, %v335
  %v349 = vpack.c.bf16 %v336, %v336
  %v350 = vpack.c.bf16 %v337, %v337
  %v351 = vpack.c.bf16 %v338, %v338
  %v352 = vpack.c.bf16 %v339, %v339
  %v353 = vpack.c.bf16 %v340, %v340
  %v354 = vpack.c.bf16 %v341, %v341
  %v355 = vpack.c.bf16 %v342, %v342
  %v356 = vpack.c.bf16 %v343, %v343
  %v357 = vpack.c.bf16 %v344, %v344
  %v358 = vpack.c.bf16 %v345, %v345
  %vm359 = vcmask 125952
  %360 = vst.msk [vmem:[%s5] sm:$0xf] %vm359, %v346
  %361 = vst.msk [vmem:[%s5 + $0x4] sm:$0xf] %vm359, %v347
  %362 = vst.msk [vmem:[%s5 + $0x8] sm:$0xf] %vm359, %v348
  %363 = vst.msk [vmem:[%s5 + $0xc] sm:$0xf] %vm359, %v349
  %364 = vst.msk [vmem:[%s5 + $0x10] sm:$0xf] %vm359, %v350
  %365 = vst.msk [vmem:[%s5 + $0x14] sm:$0xf] %vm359, %v351
  %366 = vst.msk [vmem:[%s5 + $0x18] sm:$0xf] %vm359, %v352
  %367 = vst.msk [vmem:[%s5 + $0x1c] sm:$0xf] %vm359, %v353
  %368 = vst.msk [vmem:[%s5 + $0x20] sm:$0xf] %vm359, %v354
  %369 = vst.msk [vmem:[%s5 + $0x24] sm:$0xf] %vm359, %v355
  %370 = vst.msk [vmem:[%s5 + $0x28] sm:$0xf] %vm359, %v356
  %371 = vst.msk [vmem:[%s5 + $0x2c] sm:$0xf] %vm359, %v357
  %vm372 = vcmask 122880
  %373 = vst.msk [vmem:[%s5 + $0x30] sm:$0x1] %vm372, %v358
  // Predicated region
  $region22: #{_encoder_forward.4} parent=0 // pred_check
    _
  $region23: #{_encoder_forward.4} parent=0 // pred_check_branch
    %375 = sbr.rel (0) target = $region25
  $region24: #{_encoder_forward.4} parent=0 // pred_region
    _
  $region25: #{_encoder_forward.4} parent=0 // pred_fallthru
    _
  // Predicated region
  $region26: #{_encoder_forward.4} parent=0 // pred_check
    _
  $region27: #{_encoder_forward.4} parent=0 // pred_check_branch
    %377 = sbr.rel (0) target = $region29
  $region28: #{_encoder_forward.4} parent=0 // pred_region
    _
  $region29: #{_encoder_forward.4} parent=0 // pred_fallthru
    _

// kernel: _encoder_forward.5
$region0: #{_encoder_forward.5}
  #allocation0 [shape = 'u32[]', space=smem, size = 0x4, offset = 0x4, fixed_abs, tag = 'smem constant byte address 0x4 - core index']
  #allocation1 [shape = 'u32[72,128]{1,0:T(1,128)}', space=vmem, size = 0x9000, scoped, tag = 'internal scratch']
  %s0 = inlined_call_operand.vmem [shape: bf16[9,2,144], index: 0, kind: input, shape index: {}]
  %s1 = inlined_call_operand.vmem [shape: bf16[144,32], index: 1, kind: input, shape index: {}]
  %s2 = inlined_call_operand.vmem [shape: f32[1,32], index: 2, kind: input, shape index: {}]
  %s3 = inlined_call_operand.vmem [shape: bf16[9,32,128], index: 3, kind: input, shape index: {}]
  %s4 = inlined_call_operand.vmem [shape: f32[1,128], index: 4, kind: input, shape index: {}]
  %s5 = inlined_call_operand.vmem [shape: bf16[128,16], index: 5, kind: input, shape index: {}]
  %s6 = inlined_call_operand.vmem [shape: f32[1,16], index: 6, kind: input, shape index: {}]
  %s7 = inlined_call_operand.hbm [shape: f32[2,16], index: 7, kind: output, shape index: {}]
  %s8 = sld [smem:[#allocation0]]
  $region38: #{_encoder_forward.5} parent=0
    _
  %s10 = ssub.s32 1, %s8
  %s11 = scalar_select 0, %s10, %s8
  $region1: #{_encoder_forward.5} parent=0
    #allocation2 [shape = 'u8[1024]{0}', space=vmem, size = 0x400, scoped, tag = 'output window, operand 0, single buffered']
    #allocation3 [shape = 's32[1]{0}', space=sflag, size = 0x4, scoped, tag = 'scoped memory for _encoder_forward.5']
    %12 = vsyncpa [#allocation3], 0
    // Predicated region
    $region2: #{_encoder_forward.5} parent=1 // pred_check
      _
    $region3: #{_encoder_forward.5} parent=1 // pred_check_branch
      %14 = sbr.rel (0) target = $region5
    $region4: #{_encoder_forward.5} parent=1 // pred_region
      _
    $region5: #{_encoder_forward.5} parent=1 // pred_fallthru
      _
    // Predicated region
    $region6: #{_encoder_forward.5} parent=1 // pred_check
      _
    $region7: #{_encoder_forward.5} parent=1 // pred_check_branch
      %16 = sbr.rel (0) target = $region9
    $region8: #{_encoder_forward.5} parent=1 // pred_region
      _
    $region9: #{_encoder_forward.5} parent=1 // pred_fallthru
      _
    // Predicated region
    $region10: #{_encoder_forward.5} parent=1 // pred_check
      _
    $region11: #{_encoder_forward.5} parent=1 // pred_check_branch
      %18 = sbr.rel (0) target = $region13
    $region12: #{_encoder_forward.5} parent=1 // pred_region
      _
    $region13: #{_encoder_forward.5} parent=1 // pred_fallthru
      _
    // Predicated region
    $region14: #{_encoder_forward.5} parent=1 // pred_check
      _
    $region15: #{_encoder_forward.5} parent=1 // pred_check_branch
      %20 = sbr.rel (0) target = $region17
    $region16: #{_encoder_forward.5} parent=1 // pred_region
      _
    $region17: #{_encoder_forward.5} parent=1 // pred_fallthru
      _
    // Predicated region
    $region18: #{_encoder_forward.5} parent=1 // pred_check
      _
    $region19: #{_encoder_forward.5} parent=1 // pred_check_branch
      %22 = sbr.rel (0) target = $region21
    $region20: #{_encoder_forward.5} parent=1 // pred_region
      _
    $region21: #{_encoder_forward.5} parent=1 // pred_fallthru
      _
    // Predicated region
    $region22: #{_encoder_forward.5} parent=1 // pred_check
      _
    $region23: #{_encoder_forward.5} parent=1 // pred_check_branch
      %24 = sbr.rel (0) target = $region25
    $region24: #{_encoder_forward.5} parent=1 // pred_region
      _
    $region25: #{_encoder_forward.5} parent=1 // pred_fallthru
      _
    // Predicated region
    $region26: #{_encoder_forward.5} parent=1 // pred_check
      _
    $region27: #{_encoder_forward.5} parent=1 // pred_check_branch
      %26 = sbr.rel (0) target = $region29
    $region28: #{_encoder_forward.5} parent=1 // pred_region
      _
    $region29: #{_encoder_forward.5} parent=1 // pred_fallthru
      _
    %v28 = vld [vmem:[%s0] sm:$0x3]
    %v29 = vld [vmem:[%s1] sm:$0xf]
    %v30 = vld [vmem:[%s1 + $0x4] sm:$0xf]
    %v31 = vld [vmem:[%s1 + $0x8] sm:$0xf]
    %v32 = vld [vmem:[%s1 + $0xc] sm:$0xf]
    %v33 = vld [vmem:[%s1 + $0x10] sm:$0xf]
    %v34 = vld [vmem:[%s1 + $0x14] sm:$0xf]
    %v35 = vld [vmem:[%s1 + $0x18] sm:$0xf]
    %v36 = vld [vmem:[%s1 + $0x1c] sm:$0xf]
    %v37 = vld [vmem:[%s1 + $0x20] sm:$0xf]
    %v38 = vld [vmem:[%s1 + $0x24] sm:$0xf]
    %v39 = vld [vmem:[%s1 + $0x28] sm:$0xf]
    %v40 = vld [vmem:[%s1 + $0x2c] sm:$0xf]
    %v41 = vld [vmem:[%s1 + $0x30] sm:$0xf]
    %v42 = vld [vmem:[%s1 + $0x34] sm:$0xf]
    %v43 = vld [vmem:[%s1 + $0x38] sm:$0xf]
    %v44 = vld [vmem:[%s1 + $0x3c] sm:$0xf]
    %v45 = vld [vmem:[%s1 + $0x40] sm:$0xf]
    %v46 = vld [vmem:[%s1 + $0x44] sm:$0xf]
    %v47 = vld [vmem:[%s2] sm:$0x1]
    %v49 = vperm.slane %v47, 0
    %52 = vst [vmem:[#allocation1] ss:$9 sm:$0xff] %v28
    %v53 = vld [vmem:[#allocation1] sm:$0xff]
    %v54 = vld [vmem:[#allocation1 + $0x9] sm:$0xff]
    %v74 = vunpack.c.l.b16 %v29
    %v75 = vunpack.c.l.b16 %v30
    %v76 = vunpack.c.l.b16 %v31
    %v77 = vunpack.c.l.b16 %v32
    %v78 = vunpack.c.l.b16 %v33
    %v79 = vunpack.c.l.b16 %v34
    %v80 = vunpack.c.l.b16 %v35
    %v81 = vunpack.c.l.b16 %v36
    %v82 = vunpack.c.l.b16 %v37
    %v83 = vunpack.c.l.b16 %v38
    %v84 = vunpack.c.l.b16 %v39
    %v85 = vunpack.c.l.b16 %v40
    %v86 = vunpack.c.l.b16 %v41
    %v87 = vunpack.c.l.b16 %v42
    %v88 = vunpack.c.l.b16 %v43
    %v89 = vunpack.c.l.b16 %v44
    %v90 = vunpack.c.l.b16 %v45
    %v91 = vunpack.c.l.b16 %v46
    %v92 = vpack.c.b16 %v75, %v74
    %v93 = vpack.c.b16 %v77, %v76
    %v94 = vpack.c.b16 %v79, %v78
    %v95 = vpack.c.b16 %v81, %v80
    %v96 = vpack.c.b16 %v83, %v82
    %v97 = vpack.c.b16 %v85, %v84
    %v98 = vpack.c.b16 %v87, %v86
    %v99 = vpack.c.b16 %v89, %v88
    %v100 = vpack.c.b16 %v91, %v90
    %vm110 = vcmask 130048
    %v111 = vsel %vm110, %v54, 0
    %113 = vmatpush.bf16.msra.mxu0 %v99
    %114 = vmatpush.bf16.msra.mxu0 %v98
    %115 = vmatpush.bf16.msra.mxu0 %v97
    %116 = vmatpush.bf16.msra.mxu0 %v96
    %117 = vmatpush.bf16.msra.mxu0 %v95
    %118 = vmatpush.bf16.msra.mxu0 %v94
    %119 = vmatpush.bf16.msra.mxu0 %v93
    %120 = vmatpush.bf16.msra.mxu0 %v92
    %121 = vmatmul.bf16.gmra.mxu0 %v53
    %v122 = vpop.f32.mrf.mxu0
    %v123 = vadd.f32 %v49, %v122
    %v124 = vpop.f32.mrf.mxu0
    %125 = vdwg.mxu0
    %126 = vmatpush.bf16.msra.mxu0 0
    %127 = vmatpush.bf16.msra.mxu0 0
    %128 = vmatpush.bf16.msra.mxu0 0
    %129 = vmatpush.bf16.msra.mxu0 0
    %130 = vmatpush.bf16.msra.mxu0 0
    %131 = vmatpush.bf16.msra.mxu0 0
    %132 = vmatpush.bf16.msra.mxu0 0
    %133 = vmatpush.bf16.msra.mxu0 %v100
    %134 = vmatmul.bf16.gmra.mxu0 %v111
    %v135 = vpop.f32.mrf.mxu0
    %v136 = vadd.f32 %v123, %v135
    %v137 = vpop.f32.mrf.mxu0
    %138 = vdwg.mxu0
    %v139 = vmax.f32 %v136, 0.0
    %v140 = vpack.c.bf16 %v139, %v139
    %v141 = vld [vmem:[%s3] sm:$0xf]
    %v142 = vld [vmem:[%s3 + $0x4] sm:$0xf]
    %v143 = vld [vmem:[%s3 + $0x8] sm:$0xf]
    %v144 = vld [vmem:[%s3 + $0xc] sm:$0xf]
    %s145 = scalar_lea.vmem %s0, 2
    %v146 = vld [vmem:[%s145] sm:$0x3]
    %148 = vst [vmem:[#allocation1] ss:$9 sm:$0xff] %v146
    %v149 = vld [vmem:[#allocation1] sm:$0xff]
    %v150 = vld [vmem:[#allocation1 + $0x9] sm:$0xff]
    %v152 = vsel %vm110, %v150, 0
    %154 = vmatpush.bf16.msra.mxu0 %v99
    %155 = vmatpush.bf16.msra.mxu0 %v98
    %156 = vmatpush.bf16.msra.mxu0 %v97
    %157 = vmatpush.bf16.msra.mxu0 %v96
    %158 = vmatpush.bf16.msra.mxu0 %v95
    %159 = vmatpush.bf16.msra.mxu0 %v94
    %160 = vmatpush.bf16.msra.mxu0 %v93
    %161 = vmatpush.bf16.msra.mxu0 %v92
    %162 = vmatmul.bf16.gmra.mxu0 %v149
    %v163 = vpop.f32.mrf.mxu0
    %v164 = vadd.f32 %v49, %v163
    %v165 = vpop.f32.mrf.mxu0
    %166 = vdwg.mxu0
    %167 = vmatpush.bf16.msra.mxu0 0
    %168 = vmatpush.bf16.msra.mxu0 0
    %169 = vmatpush.bf16.msra.mxu0 0
    %170 = vmatpush.bf16.msra.mxu0 0
    %171 = vmatpush.bf16.msra.mxu0 0
    %172 = vmatpush.bf16.msra.mxu0 0
    %173 = vmatpush.bf16.msra.mxu0 0
    %174 = vmatpush.bf16.msra.mxu0 %v100
    %175 = vmatmul.bf16.gmra.mxu0 %v152
    %v176 = vpop.f32.mrf.mxu0
    %v177 = vadd.f32 %v164, %v176
    %v178 = vpop.f32.mrf.mxu0
    %179 = vdwg.mxu0
    %v180 = vmax.f32 %v177, 0.0
    %v181 = vpack.c.bf16 %v180, %v180
    %s182 = scalar_lea.vmem %s3, 16
    %v183 = vld [vmem:[%s182] sm:$0xf]
    %v184 = vld [vmem:[%s182 + $0x4] sm:$0xf]
    %v185 = vld [vmem:[%s182 + $0x8] sm:$0xf]
    %v186 = vld [vmem:[%s182 + $0xc] sm:$0xf]
    %v191 = vunpack.c.l.b16 %v183
    %v192 = vunpack.c.l.b16 %v184
    %v193 = vunpack.c.l.b16 %v185
    %v194 = vunpack.c.l.b16 %v186
    %v195 = vpack.c.b16 %v192, %v191
    %v196 = vpack.c.b16 %v194, %v193
    %vm199 = vcmask 261120
    %v201 = vsel %vm199, %v181, 0
    %203 = vmatpush.bf16.msra.mxu0 0
    %204 = vmatpush.bf16.msra.mxu0 0
    %205 = vmatpush.bf16.msra.mxu0 0
    %206 = vmatpush.bf16.msra.mxu0 0
    %207 = vmatpush.bf16.msra.mxu0 0
    %208 = vmatpush.bf16.msra.mxu0 0
    %209 = vmatpush.bf16.msra.mxu0 %v196
    %210 = vmatpush.bf16.msra.mxu0 %v195
    %211 = vmatmul.bf16.gmra.mxu0 %v201
    %v212 = vpop.f32.mrf.mxu0
    %v213 = vadd.f32 0.0, %v212
    %v214 = vpop.f32.mrf.mxu0
    %215 = vdwg.mxu0
    %v220 = vunpack.c.l.b16 %v141
    %v221 = vunpack.c.l.b16 %v142
    %v222 = vunpack.c.l.b16 %v143
    %v223 = vunpack.c.l.b16 %v144
    %v224 = vpack.c.b16 %v221, %v220
    %v225 = vpack.c.b16 %v223, %v222
    %v229 = vsel %vm199, %v140, 0
    %231 = vmatpush.bf16.msra.mxu0 0
    %232 = vmatpush.bf16.msra.mxu0 0
    %233 = vmatpush.bf16.msra.mxu0 0
    %234 = vmatpush.bf16.msra.mxu0 0
    %235 = vmatpush.bf16.msra.mxu0 0
    %236 = vmatpush.bf16.msra.mxu0 0
    %237 = vmatpush.bf16.msra.mxu0 %v225
    %238 = vmatpush.bf16.msra.mxu0 %v224
    %239 = vmatmul.bf16.gmra.mxu0 %v229
    %v240 = vpop.f32.mrf.mxu0
    %v241 = vadd.f32 %v213, %v240
    %v242 = vpop.f32.mrf.mxu0
    %243 = vdwg.mxu0
    %s244 = scalar_lea.vmem %s0, 4
    %v245 = vld [vmem:[%s244] sm:$0x3]
    %247 = vst [vmem:[#allocation1] ss:$9 sm:$0xff] %v245
    %v248 = vld [vmem:[#allocation1] sm:$0xff]
    %v249 = vld [vmem:[#allocation1 + $0x9] sm:$0xff]
    %v251 = vsel %vm110, %v249, 0
    %253 = vmatpush.bf16.msra.mxu0 %v99
    %254 = vmatpush.bf16.msra.mxu0 %v98
    %255 = vmatpush.bf16.msra.mxu0 %v97
    %256 = vmatpush.bf16.msra.mxu0 %v96
    %257 = vmatpush.bf16.msra.mxu0 %v95
    %258 = vmatpush.bf16.msra.mxu0 %v94
    %259 = vmatpush.bf16.msra.mxu0 %v93
    %260 = vmatpush.bf16.msra.mxu0 %v92
    %261 = vmatmul.bf16.gmra.mxu0 %v248
    %v262 = vpop.f32.mrf.mxu0
    %v263 = vadd.f32 %v49, %v262
    %v264 = vpop.f32.mrf.mxu0
    %265 = vdwg.mxu0
    %266 = vmatpush.bf16.msra.mxu0 0
    %267 = vmatpush.bf16.msra.mxu0 0
    %268 = vmatpush.bf16.msra.mxu0 0
    %269 = vmatpush.bf16.msra.mxu0 0
    %270 = vmatpush.bf16.msra.mxu0 0
    %271 = vmatpush.bf16.msra.mxu0 0
    %272 = vmatpush.bf16.msra.mxu0 0
    %273 = vmatpush.bf16.msra.mxu0 %v100
    %274 = vmatmul.bf16.gmra.mxu0 %v251
    %v275 = vpop.f32.mrf.mxu0
    %v276 = vadd.f32 %v263, %v275
    %v277 = vpop.f32.mrf.mxu0
    %278 = vdwg.mxu0
    %v279 = vmax.f32 %v276, 0.0
    %v280 = vpack.c.bf16 %v279, %v279
    %s281 = scalar_lea.vmem %s3, 32
    %v282 = vld [vmem:[%s281] sm:$0xf]
    %v283 = vld [vmem:[%s281 + $0x4] sm:$0xf]
    %v284 = vld [vmem:[%s281 + $0x8] sm:$0xf]
    %v285 = vld [vmem:[%s281 + $0xc] sm:$0xf]
    %v290 = vunpack.c.l.b16 %v282
    %v291 = vunpack.c.l.b16 %v283
    %v292 = vunpack.c.l.b16 %v284
    %v293 = vunpack.c.l.b16 %v285
    %v294 = vpack.c.b16 %v291, %v290
    %v295 = vpack.c.b16 %v293, %v292
    %v299 = vsel %vm199, %v280, 0
    %301 = vmatpush.bf16.msra.mxu0 0
    %302 = vmatpush.bf16.msra.mxu0 0
    %303 = vmatpush.bf16.msra.mxu0 0
    %304 = vmatpush.bf16.msra.mxu0 0
    %305 = vmatpush.bf16.msra.mxu0 0
    %306 = vmatpush.bf16.msra.mxu0 0
    %307 = vmatpush.bf16.msra.mxu0 %v295
    %308 = vmatpush.bf16.msra.mxu0 %v294
    %309 = vmatmul.bf16.gmra.mxu0 %v299
    %v310 = vpop.f32.mrf.mxu0
    %v311 = vadd.f32 0.0, %v310
    %v312 = vpop.f32.mrf.mxu0
    %313 = vdwg.mxu0
    %v314 = vadd.f32 %v241, %v311
    %s315 = scalar_lea.vmem %s0, 6
    %v316 = vld [vmem:[%s315] sm:$0x3]
    %318 = vst [vmem:[#allocation1] ss:$9 sm:$0xff] %v316
    %v319 = vld [vmem:[#allocation1] sm:$0xff]
    %v320 = vld [vmem:[#allocation1 + $0x9] sm:$0xff]
    %v322 = vsel %vm110, %v320, 0
    %324 = vmatpush.bf16.msra.mxu0 %v99
    %325 = vmatpush.bf16.msra.mxu0 %v98
    %326 = vmatpush.bf16.msra.mxu0 %v97
    %327 = vmatpush.bf16.msra.mxu0 %v96
    %328 = vmatpush.bf16.msra.mxu0 %v95
    %329 = vmatpush.bf16.msra.mxu0 %v94
    %330 = vmatpush.bf16.msra.mxu0 %v93
    %331 = vmatpush.bf16.msra.mxu0 %v92
    %332 = vmatmul.bf16.gmra.mxu0 %v319
    %v333 = vpop.f32.mrf.mxu0
    %v334 = vadd.f32 %v49, %v333
    %v335 = vpop.f32.mrf.mxu0
    %336 = vdwg.mxu0
    %337 = vmatpush.bf16.msra.mxu0 0
    %338 = vmatpush.bf16.msra.mxu0 0
    %339 = vmatpush.bf16.msra.mxu0 0
    %340 = vmatpush.bf16.msra.mxu0 0
    %341 = vmatpush.bf16.msra.mxu0 0
    %342 = vmatpush.bf16.msra.mxu0 0
    %343 = vmatpush.bf16.msra.mxu0 0
    %344 = vmatpush.bf16.msra.mxu0 %v100
    %345 = vmatmul.bf16.gmra.mxu0 %v322
    %v346 = vpop.f32.mrf.mxu0
    %v347 = vadd.f32 %v334, %v346
    %v348 = vpop.f32.mrf.mxu0
    %349 = vdwg.mxu0
    %v350 = vmax.f32 %v347, 0.0
    %v351 = vpack.c.bf16 %v350, %v350
    %s352 = scalar_lea.vmem %s3, 48
    %v353 = vld [vmem:[%s352] sm:$0xf]
    %v354 = vld [vmem:[%s352 + $0x4] sm:$0xf]
    %v355 = vld [vmem:[%s352 + $0x8] sm:$0xf]
    %v356 = vld [vmem:[%s352 + $0xc] sm:$0xf]
    %v361 = vunpack.c.l.b16 %v353
    %v362 = vunpack.c.l.b16 %v354
    %v363 = vunpack.c.l.b16 %v355
    %v364 = vunpack.c.l.b16 %v356
    %v365 = vpack.c.b16 %v362, %v361
    %v366 = vpack.c.b16 %v364, %v363
    %v370 = vsel %vm199, %v351, 0
    %372 = vmatpush.bf16.msra.mxu0 0
    %373 = vmatpush.bf16.msra.mxu0 0
    %374 = vmatpush.bf16.msra.mxu0 0
    %375 = vmatpush.bf16.msra.mxu0 0
    %376 = vmatpush.bf16.msra.mxu0 0
    %377 = vmatpush.bf16.msra.mxu0 0
    %378 = vmatpush.bf16.msra.mxu0 %v366
    %379 = vmatpush.bf16.msra.mxu0 %v365
    %380 = vmatmul.bf16.gmra.mxu0 %v370
    %v381 = vpop.f32.mrf.mxu0
    %v382 = vadd.f32 0.0, %v381
    %v383 = vpop.f32.mrf.mxu0
    %384 = vdwg.mxu0
    %v385 = vadd.f32 %v314, %v382
    %s386 = scalar_lea.vmem %s0, 8
    %v387 = vld [vmem:[%s386] sm:$0x3]
    %389 = vst [vmem:[#allocation1] ss:$9 sm:$0xff] %v387
    %v390 = vld [vmem:[#allocation1] sm:$0xff]
    %v391 = vld [vmem:[#allocation1 + $0x9] sm:$0xff]
    %v393 = vsel %vm110, %v391, 0
    %395 = vmatpush.bf16.msra.mxu0 %v99
    %396 = vmatpush.bf16.msra.mxu0 %v98
    %397 = vmatpush.bf16.msra.mxu0 %v97
    %398 = vmatpush.bf16.msra.mxu0 %v96
    %399 = vmatpush.bf16.msra.mxu0 %v95
    %400 = vmatpush.bf16.msra.mxu0 %v94
    %401 = vmatpush.bf16.msra.mxu0 %v93
    %402 = vmatpush.bf16.msra.mxu0 %v92
    %403 = vmatmul.bf16.gmra.mxu0 %v390
    %v404 = vpop.f32.mrf.mxu0
    %v405 = vadd.f32 %v49, %v404
    %v406 = vpop.f32.mrf.mxu0
    %407 = vdwg.mxu0
    %408 = vmatpush.bf16.msra.mxu0 0
    %409 = vmatpush.bf16.msra.mxu0 0
    %410 = vmatpush.bf16.msra.mxu0 0
    %411 = vmatpush.bf16.msra.mxu0 0
    %412 = vmatpush.bf16.msra.mxu0 0
    %413 = vmatpush.bf16.msra.mxu0 0
    %414 = vmatpush.bf16.msra.mxu0 0
    %415 = vmatpush.bf16.msra.mxu0 %v100
    %416 = vmatmul.bf16.gmra.mxu0 %v393
    %v417 = vpop.f32.mrf.mxu0
    %v418 = vadd.f32 %v405, %v417
    %v419 = vpop.f32.mrf.mxu0
    %420 = vdwg.mxu0
    %v421 = vmax.f32 %v418, 0.0
    %v422 = vpack.c.bf16 %v421, %v421
    %s423 = scalar_lea.vmem %s3, 64
    %v424 = vld [vmem:[%s423] sm:$0xf]
    %v425 = vld [vmem:[%s423 + $0x4] sm:$0xf]
    %v426 = vld [vmem:[%s423 + $0x8] sm:$0xf]
    %v427 = vld [vmem:[%s423 + $0xc] sm:$0xf]
    %v432 = vunpack.c.l.b16 %v424
    %v433 = vunpack.c.l.b16 %v425
    %v434 = vunpack.c.l.b16 %v426
    %v435 = vunpack.c.l.b16 %v427
    %v436 = vpack.c.b16 %v433, %v432
    %v437 = vpack.c.b16 %v435, %v434
    %v441 = vsel %vm199, %v422, 0
    %443 = vmatpush.bf16.msra.mxu0 0
    %444 = vmatpush.bf16.msra.mxu0 0
    %445 = vmatpush.bf16.msra.mxu0 0
    %446 = vmatpush.bf16.msra.mxu0 0
    %447 = vmatpush.bf16.msra.mxu0 0
    %448 = vmatpush.bf16.msra.mxu0 0
    %449 = vmatpush.bf16.msra.mxu0 %v437
    %450 = vmatpush.bf16.msra.mxu0 %v436
    %451 = vmatmul.bf16.gmra.mxu0 %v441
    %v452 = vpop.f32.mrf.mxu0
    %v453 = vadd.f32 0.0, %v452
    %v454 = vpop.f32.mrf.mxu0
    %455 = vdwg.mxu0
    %v456 = vadd.f32 %v385, %v453
    %s457 = scalar_lea.vmem %s0, 10
    %v458 = vld [vmem:[%s457] sm:$0x3]
    %460 = vst [vmem:[#allocation1] ss:$9 sm:$0xff] %v458
    %v461 = vld [vmem:[#allocation1] sm:$0xff]
    %v462 = vld [vmem:[#allocation1 + $0x9] sm:$0xff]
    %v464 = vsel %vm110, %v462, 0
    %466 = vmatpush.bf16.msra.mxu0 %v99
    %467 = vmatpush.bf16.msra.mxu0 %v98
    %468 = vmatpush.bf16.msra.mxu0 %v97
    %469 = vmatpush.bf16.msra.mxu0 %v96
    %470 = vmatpush.bf16.msra.mxu0 %v95
    %471 = vmatpush.bf16.msra.mxu0 %v94
    %472 = vmatpush.bf16.msra.mxu0 %v93
    %473 = vmatpush.bf16.msra.mxu0 %v92
    %474 = vmatmul.bf16.gmra.mxu0 %v461
    %v475 = vpop.f32.mrf.mxu0
    %v476 = vadd.f32 %v49, %v475
    %v477 = vpop.f32.mrf.mxu0
    %478 = vdwg.mxu0
    %479 = vmatpush.bf16.msra.mxu0 0
    %480 = vmatpush.bf16.msra.mxu0 0
    %481 = vmatpush.bf16.msra.mxu0 0
    %482 = vmatpush.bf16.msra.mxu0 0
    %483 = vmatpush.bf16.msra.mxu0 0
    %484 = vmatpush.bf16.msra.mxu0 0
    %485 = vmatpush.bf16.msra.mxu0 0
    %486 = vmatpush.bf16.msra.mxu0 %v100
    %487 = vmatmul.bf16.gmra.mxu0 %v464
    %v488 = vpop.f32.mrf.mxu0
    %v489 = vadd.f32 %v476, %v488
    %v490 = vpop.f32.mrf.mxu0
    %491 = vdwg.mxu0
    %v492 = vmax.f32 %v489, 0.0
    %v493 = vpack.c.bf16 %v492, %v492
    %s494 = scalar_lea.vmem %s3, 80
    %v495 = vld [vmem:[%s494] sm:$0xf]
    %v496 = vld [vmem:[%s494 + $0x4] sm:$0xf]
    %v497 = vld [vmem:[%s494 + $0x8] sm:$0xf]
    %v498 = vld [vmem:[%s494 + $0xc] sm:$0xf]
    %v503 = vunpack.c.l.b16 %v495
    %v504 = vunpack.c.l.b16 %v496
    %v505 = vunpack.c.l.b16 %v497
    %v506 = vunpack.c.l.b16 %v498
    %v507 = vpack.c.b16 %v504, %v503
    %v508 = vpack.c.b16 %v506, %v505
    %v512 = vsel %vm199, %v493, 0
    %514 = vmatpush.bf16.msra.mxu0 0
    %515 = vmatpush.bf16.msra.mxu0 0
    %516 = vmatpush.bf16.msra.mxu0 0
    %517 = vmatpush.bf16.msra.mxu0 0
    %518 = vmatpush.bf16.msra.mxu0 0
    %519 = vmatpush.bf16.msra.mxu0 0
    %520 = vmatpush.bf16.msra.mxu0 %v508
    %521 = vmatpush.bf16.msra.mxu0 %v507
    %522 = vmatmul.bf16.gmra.mxu0 %v512
    %v523 = vpop.f32.mrf.mxu0
    %v524 = vadd.f32 0.0, %v523
    %v525 = vpop.f32.mrf.mxu0
    %526 = vdwg.mxu0
    %v527 = vadd.f32 %v456, %v524
    %s528 = scalar_lea.vmem %s0, 12
    %v529 = vld [vmem:[%s528] sm:$0x3]
    %531 = vst [vmem:[#allocation1] ss:$9 sm:$0xff] %v529
    %v532 = vld [vmem:[#allocation1] sm:$0xff]
    %v533 = vld [vmem:[#allocation1 + $0x9] sm:$0xff]
    %v535 = vsel %vm110, %v533, 0
    %537 = vmatpush.bf16.msra.mxu0 %v99
    %538 = vmatpush.bf16.msra.mxu0 %v98
    %539 = vmatpush.bf16.msra.mxu0 %v97
    %540 = vmatpush.bf16.msra.mxu0 %v96
    %541 = vmatpush.bf16.msra.mxu0 %v95
    %542 = vmatpush.bf16.msra.mxu0 %v94
    %543 = vmatpush.bf16.msra.mxu0 %v93
    %544 = vmatpush.bf16.msra.mxu0 %v92
    %545 = vmatmul.bf16.gmra.mxu0 %v532
    %v546 = vpop.f32.mrf.mxu0
    %v547 = vadd.f32 %v49, %v546
    %v548 = vpop.f32.mrf.mxu0
    %549 = vdwg.mxu0
    %550 = vmatpush.bf16.msra.mxu0 0
    %551 = vmatpush.bf16.msra.mxu0 0
    %552 = vmatpush.bf16.msra.mxu0 0
    %553 = vmatpush.bf16.msra.mxu0 0
    %554 = vmatpush.bf16.msra.mxu0 0
    %555 = vmatpush.bf16.msra.mxu0 0
    %556 = vmatpush.bf16.msra.mxu0 0
    %557 = vmatpush.bf16.msra.mxu0 %v100
    %558 = vmatmul.bf16.gmra.mxu0 %v535
    %v559 = vpop.f32.mrf.mxu0
    %v560 = vadd.f32 %v547, %v559
    %v561 = vpop.f32.mrf.mxu0
    %562 = vdwg.mxu0
    %v563 = vmax.f32 %v560, 0.0
    %v564 = vpack.c.bf16 %v563, %v563
    %s565 = scalar_lea.vmem %s3, 96
    %v566 = vld [vmem:[%s565] sm:$0xf]
    %v567 = vld [vmem:[%s565 + $0x4] sm:$0xf]
    %v568 = vld [vmem:[%s565 + $0x8] sm:$0xf]
    %v569 = vld [vmem:[%s565 + $0xc] sm:$0xf]
    %v574 = vunpack.c.l.b16 %v566
    %v575 = vunpack.c.l.b16 %v567
    %v576 = vunpack.c.l.b16 %v568
    %v577 = vunpack.c.l.b16 %v569
    %v578 = vpack.c.b16 %v575, %v574
    %v579 = vpack.c.b16 %v577, %v576
    %v583 = vsel %vm199, %v564, 0
    %585 = vmatpush.bf16.msra.mxu0 0
    %586 = vmatpush.bf16.msra.mxu0 0
    %587 = vmatpush.bf16.msra.mxu0 0
    %588 = vmatpush.bf16.msra.mxu0 0
    %589 = vmatpush.bf16.msra.mxu0 0
    %590 = vmatpush.bf16.msra.mxu0 0
    %591 = vmatpush.bf16.msra.mxu0 %v579
    %592 = vmatpush.bf16.msra.mxu0 %v578
    %593 = vmatmul.bf16.gmra.mxu0 %v583
    %v594 = vpop.f32.mrf.mxu0
    %v595 = vadd.f32 0.0, %v594
    %v596 = vpop.f32.mrf.mxu0
    %597 = vdwg.mxu0
    %v598 = vadd.f32 %v527, %v595
    %s599 = scalar_lea.vmem %s0, 14
    %v600 = vld [vmem:[%s599] sm:$0x3]
    %602 = vst [vmem:[#allocation1] ss:$9 sm:$0xff] %v600
    %v603 = vld [vmem:[#allocation1] sm:$0xff]
    %v604 = vld [vmem:[#allocation1 + $0x9] sm:$0xff]
    %v606 = vsel %vm110, %v604, 0
    %608 = vmatpush.bf16.msra.mxu0 %v99
    %609 = vmatpush.bf16.msra.mxu0 %v98
    %610 = vmatpush.bf16.msra.mxu0 %v97
    %611 = vmatpush.bf16.msra.mxu0 %v96
    %612 = vmatpush.bf16.msra.mxu0 %v95
    %613 = vmatpush.bf16.msra.mxu0 %v94
    %614 = vmatpush.bf16.msra.mxu0 %v93
    %615 = vmatpush.bf16.msra.mxu0 %v92
    %616 = vmatmul.bf16.gmra.mxu0 %v603
    %v617 = vpop.f32.mrf.mxu0
    %v618 = vadd.f32 %v49, %v617
    %v619 = vpop.f32.mrf.mxu0
    %620 = vdwg.mxu0
    %621 = vmatpush.bf16.msra.mxu0 0
    %622 = vmatpush.bf16.msra.mxu0 0
    %623 = vmatpush.bf16.msra.mxu0 0
    %624 = vmatpush.bf16.msra.mxu0 0
    %625 = vmatpush.bf16.msra.mxu0 0
    %626 = vmatpush.bf16.msra.mxu0 0
    %627 = vmatpush.bf16.msra.mxu0 0
    %628 = vmatpush.bf16.msra.mxu0 %v100
    %629 = vmatmul.bf16.gmra.mxu0 %v606
    %v630 = vpop.f32.mrf.mxu0
    %v631 = vadd.f32 %v618, %v630
    %v632 = vpop.f32.mrf.mxu0
    %633 = vdwg.mxu0
    %v634 = vmax.f32 %v631, 0.0
    %v635 = vpack.c.bf16 %v634, %v634
    %s636 = scalar_lea.vmem %s3, 112
    %v637 = vld [vmem:[%s636] sm:$0xf]
    %v638 = vld [vmem:[%s636 + $0x4] sm:$0xf]
    %v639 = vld [vmem:[%s636 + $0x8] sm:$0xf]
    %v640 = vld [vmem:[%s636 + $0xc] sm:$0xf]
    %v645 = vunpack.c.l.b16 %v637
    %v646 = vunpack.c.l.b16 %v638
    %v647 = vunpack.c.l.b16 %v639
    %v648 = vunpack.c.l.b16 %v640
    %v649 = vpack.c.b16 %v646, %v645
    %v650 = vpack.c.b16 %v648, %v647
    %v654 = vsel %vm199, %v635, 0
    %656 = vmatpush.bf16.msra.mxu0 0
    %657 = vmatpush.bf16.msra.mxu0 0
    %658 = vmatpush.bf16.msra.mxu0 0
    %659 = vmatpush.bf16.msra.mxu0 0
    %660 = vmatpush.bf16.msra.mxu0 0
    %661 = vmatpush.bf16.msra.mxu0 0
    %662 = vmatpush.bf16.msra.mxu0 %v650
    %663 = vmatpush.bf16.msra.mxu0 %v649
    %664 = vmatmul.bf16.gmra.mxu0 %v654
    %v665 = vpop.f32.mrf.mxu0
    %v666 = vadd.f32 0.0, %v665
    %v667 = vpop.f32.mrf.mxu0
    %668 = vdwg.mxu0
    %v669 = vadd.f32 %v598, %v666
    %s670 = scalar_lea.vmem %s0, 16
    %v671 = vld [vmem:[%s670] sm:$0x3]
    %673 = vst [vmem:[#allocation1] ss:$9 sm:$0xff] %v671
    %v674 = vld [vmem:[#allocation1] sm:$0xff]
    %v675 = vld [vmem:[#allocation1 + $0x9] sm:$0xff]
    %v677 = vsel %vm110, %v675, 0
    %679 = vmatpush.bf16.msra.mxu0 %v99
    %680 = vmatpush.bf16.msra.mxu0 %v98
    %681 = vmatpush.bf16.msra.mxu0 %v97
    %682 = vmatpush.bf16.msra.mxu0 %v96
    %683 = vmatpush.bf16.msra.mxu0 %v95
    %684 = vmatpush.bf16.msra.mxu0 %v94
    %685 = vmatpush.bf16.msra.mxu0 %v93
    %686 = vmatpush.bf16.msra.mxu0 %v92
    %687 = vmatmul.bf16.gmra.mxu0 %v674
    %v688 = vpop.f32.mrf.mxu0
    %v689 = vadd.f32 %v49, %v688
    %v690 = vpop.f32.mrf.mxu0
    %691 = vdwg.mxu0
    %692 = vmatpush.bf16.msra.mxu0 0
    %693 = vmatpush.bf16.msra.mxu0 0
    %694 = vmatpush.bf16.msra.mxu0 0
    %695 = vmatpush.bf16.msra.mxu0 0
    %696 = vmatpush.bf16.msra.mxu0 0
    %697 = vmatpush.bf16.msra.mxu0 0
    %698 = vmatpush.bf16.msra.mxu0 0
    %699 = vmatpush.bf16.msra.mxu0 %v100
    %700 = vmatmul.bf16.gmra.mxu0 %v677
    %v701 = vpop.f32.mrf.mxu0
    %v702 = vadd.f32 %v689, %v701
    %v703 = vpop.f32.mrf.mxu0
    %704 = vdwg.mxu0
    %v705 = vmax.f32 %v702, 0.0
    %v706 = vpack.c.bf16 %v705, %v705
    %s707 = scalar_lea.vmem %s3, 128
    %v708 = vld [vmem:[%s707] sm:$0xf]
    %v709 = vld [vmem:[%s707 + $0x4] sm:$0xf]
    %v710 = vld [vmem:[%s707 + $0x8] sm:$0xf]
    %v711 = vld [vmem:[%s707 + $0xc] sm:$0xf]
    %v716 = vunpack.c.l.b16 %v708
    %v717 = vunpack.c.l.b16 %v709
    %v718 = vunpack.c.l.b16 %v710
    %v719 = vunpack.c.l.b16 %v711
    %v720 = vpack.c.b16 %v717, %v716
    %v721 = vpack.c.b16 %v719, %v718
    %v725 = vsel %vm199, %v706, 0
    %727 = vmatpush.bf16.msra.mxu0 0
    %728 = vmatpush.bf16.msra.mxu0 0
    %729 = vmatpush.bf16.msra.mxu0 0
    %730 = vmatpush.bf16.msra.mxu0 0
    %731 = vmatpush.bf16.msra.mxu0 0
    %732 = vmatpush.bf16.msra.mxu0 0
    %733 = vmatpush.bf16.msra.mxu0 %v721
    %734 = vmatpush.bf16.msra.mxu0 %v720
    %735 = vmatmul.bf16.gmra.mxu0 %v725
    %v736 = vpop.f32.mrf.mxu0
    %v737 = vadd.f32 0.0, %v736
    %v738 = vpop.f32.mrf.mxu0
    %739 = vdwg.mxu0
    %v740 = vadd.f32 %v669, %v737
    %v741 = vld [vmem:[%s4] sm:$0x1]
    %v743 = vperm.slane %v741, 0
    %v745 = vadd.f32 %v740, %v743
    %v746 = vmax.f32 %v745, 0.0
    %v747 = vpack.c.bf16 %v746, %v746
    %v748 = vld [vmem:[%s5] sm:$0xf]
    %v749 = vld [vmem:[%s5 + $0x4] sm:$0xf]
    %v750 = vld [vmem:[%s5 + $0x8] sm:$0xf]
    %v751 = vld [vmem:[%s5 + $0xc] sm:$0xf]
    %v752 = vld [vmem:[%s5 + $0x10] sm:$0xf]
    %v753 = vld [vmem:[%s5 + $0x14] sm:$0xf]
    %v754 = vld [vmem:[%s5 + $0x18] sm:$0xf]
    %v755 = vld [vmem:[%s5 + $0x1c] sm:$0xf]
    %v756 = vld [vmem:[%s5 + $0x20] sm:$0xf]
    %v757 = vld [vmem:[%s5 + $0x24] sm:$0xf]
    %v758 = vld [vmem:[%s5 + $0x28] sm:$0xf]
    %v759 = vld [vmem:[%s5 + $0x2c] sm:$0xf]
    %v760 = vld [vmem:[%s5 + $0x30] sm:$0xf]
    %v761 = vld [vmem:[%s5 + $0x34] sm:$0xf]
    %v762 = vld [vmem:[%s5 + $0x38] sm:$0xf]
    %v763 = vld [vmem:[%s5 + $0x3c] sm:$0xf]
    %v764 = vld [vmem:[%s6] sm:$0x1]
    %v766 = vperm.slane %v764, 0
    %v784 = vunpack.c.l.b16 %v748
    %v785 = vunpack.c.l.b16 %v749
    %v786 = vunpack.c.l.b16 %v750
    %v787 = vunpack.c.l.b16 %v751
    %v788 = vunpack.c.l.b16 %v752
    %v789 = vunpack.c.l.b16 %v753
    %v790 = vunpack.c.l.b16 %v754
    %v791 = vunpack.c.l.b16 %v755
    %v792 = vunpack.c.l.b16 %v756
    %v793 = vunpack.c.l.b16 %v757
    %v794 = vunpack.c.l.b16 %v758
    %v795 = vunpack.c.l.b16 %v759
    %v796 = vunpack.c.l.b16 %v760
    %v797 = vunpack.c.l.b16 %v761
    %v798 = vunpack.c.l.b16 %v762
    %v799 = vunpack.c.l.b16 %v763
    %v800 = vpack.c.b16 %v785, %v784
    %v801 = vpack.c.b16 %v787, %v786
    %v802 = vpack.c.b16 %v789, %v788
    %v803 = vpack.c.b16 %v791, %v790
    %v804 = vpack.c.b16 %v793, %v792
    %v805 = vpack.c.b16 %v795, %v794
    %v806 = vpack.c.b16 %v797, %v796
    %v807 = vpack.c.b16 %v799, %v798
    %816 = vmatpush.bf16.msra.mxu0 %v807
    %817 = vmatpush.bf16.msra.mxu0 %v806
    %818 = vmatpush.bf16.msra.mxu0 %v805
    %819 = vmatpush.bf16.msra.mxu0 %v804
    %820 = vmatpush.bf16.msra.mxu0 %v803
    %821 = vmatpush.bf16.msra.mxu0 %v802
    %822 = vmatpush.bf16.msra.mxu0 %v801
    %823 = vmatpush.bf16.msra.mxu0 %v800
    %824 = vmatmul.bf16.gmra.mxu0 %v747
    %v825 = vpop.f32.mrf.mxu0
    %v826 = vadd.f32 %v766, %v825
    %v827 = vpop.f32.mrf.mxu0
    %828 = vdwg.mxu0
    %vm829 = vcmask 123904
    %830 = vst.msk [vmem:[#allocation2] sm:$0x3] %vm829, %v826
    // Predicated region
    $region30: #{_encoder_forward.5} parent=1 // pred_check
      _
    $region31: #{_encoder_forward.5} parent=1 // pred_check_branch
      %832 = sbr.rel (0) target = $region33
    $region32: #{_encoder_forward.5} parent=1 // pred_region
      %834 = vsyncadd [#allocation3], 0
      %s836 = sshll.u32 [#allocation2], 4
      %s837 = int_to_ptr.vmem [resolvable:$true] %s836
      %s838 = sshll.u32 %s7, 4
      %s839 = int_to_ptr.hbm [resolvable:$true] %s838
      %841 = dma.vmem_to_hbm [thread:$0]  %s837, 32, %s839, [#allocation3]
    $region33: #{_encoder_forward.5} parent=1 // pred_fallthru
      _
    // Predicated region
    $region34: #{_encoder_forward.5} parent=1 // pred_check
      _
    $region35: #{_encoder_forward.5} parent=1 // pred_check_branch
      %843 = sbr.rel (0) target = $region37
    $region36: #{_encoder_forward.5} parent=1 // pred_region
      %845 = dma.done [#allocation3], 32
    $region37: #{_encoder_forward.5} parent=1 // pred_fallthru
      _
    %846 = vsyncpa [#allocation3], 1

</llo_original>
